<compile_context>
chip_gen: v5e
topology: v5e:2x2
jax: 0.10.0
libtpu: 0.0.40
codegen_flags: <defaults>
</compile_context>

<pallas_src>
import functools

import jax
import jax.numpy as jnp
from jax.experimental import pallas as pl
from jax.experimental.pallas import tpu as pltpu


_WEIGHT_ORDER = ("w_emb", "b_emb",
                 "w_in", "b_in", "w_out", "b_out", "ln1_g", "ln1_b",
                 "w1", "b1", "w2", "b2", "ln2_g", "ln2_b",
                 "wd", "bd")


def _layernorm(y, g, b, eps=1e-5):
    # f32 throughout (VPU/EUP path; v5e has no bf16 elementwise units).
    mean = jnp.mean(y, axis=-1, keepdims=True)
    var = jnp.mean((y - mean) ** 2, axis=-1, keepdims=True)
    return (y - mean) * jax.lax.rsqrt(var + eps) * g + b


def _transformer_kernel(x_ref, w_emb_ref, b_emb_ref,
                        w_in_ref, b_in_ref, w_out_ref, b_out_ref,
                        ln1_g_ref, ln1_b_ref,
                        w1_ref, b1_ref, w2_ref, b2_ref,
                        ln2_g_ref, ln2_b_ref,
                        wd_ref, bd_ref, out_ref,
                        *, num_layers, nhead):
    bf16 = jnp.bfloat16
    bt, S, in_size = x_ref.shape                    # Bt batch elems per block
    D = w_in_ref.shape[1]
    Dh = D // nhead
    M = bt * S                                      # matmul row count
    scale = 1.0 / float(Dh) ** 0.5

    x = x_ref[...].reshape(M, in_size)              # [M, in] f32

    # Fused embedding + positional linear (exact fold: both Linears see the
    # same input, so x@(We+Wp) + (be+bp)).
    if in_size == 1:
        h = x * w_emb_ref[...] + b_emb_ref[...]     # VPU broadcast FMA, [M, D]
    else:
        h = jnp.dot(x.astype(bf16), w_emb_ref[...].astype(bf16),
                    preferred_element_type=jnp.float32) + b_emb_ref[...]

    for li in range(num_layers):                    # static unroll (small L)
        # ---- self-attention -------------------------------------------------
        qkv = jnp.dot(h.astype(bf16), w_in_ref[li],
                      preferred_element_type=jnp.float32) + b_in_ref[li]  # [M, 3D]
        w_out_li = w_out_ref[li]                    # [D, D] bf16

        # out-projection bias + per-head accumulation (no lane concatenate)
        attn = jnp.zeros((M, D), jnp.float32) + b_out_ref[li]
        for hh in range(nhead):
            lo = hh * Dh
            q = qkv[:, lo:lo + Dh].reshape(bt, S, Dh).astype(bf16)
            k = qkv[:, D + lo:D + lo + Dh].reshape(bt, S, Dh).astype(bf16)
            v = qkv[:, 2 * D + lo:2 * D + lo + Dh].reshape(bt, S, Dh).astype(bf16)

            # batched over the Bt batch elements -> Bt*S rows per MXU push
            s = jnp.einsum("bqd,bkd->bqk", q, k,
                           preferred_element_type=jnp.float32) * scale   # [bt,S,S]
            s = s - jnp.max(s, axis=-1, keepdims=True)                   # f32 softmax
            p = jnp.exp(s)
            p = p * pl.reciprocal(jnp.sum(p, axis=-1, keepdims=True), approx=True)
            o_h = jnp.einsum("bqk,bkd->bqd", p.astype(bf16), v,
                             preferred_element_type=jnp.float32)         # [bt,S,Dh]

            # accumulate this head's contribution to out_proj (sublane slice
            # of W_out rows, Dh-aligned -> free)
            attn = attn + jnp.dot(o_h.reshape(M, Dh).astype(bf16),
                                  w_out_li[lo:lo + Dh, :],
                                  preferred_element_type=jnp.float32)

        h = _layernorm(h + attn, ln1_g_ref[li], ln1_b_ref[li])            # post-norm

        # ---- feed-forward ----------------------------------------------------
        f = jnp.dot(h.astype(bf16), w1_ref[li],
                    preferred_element_type=jnp.float32) + b1_ref[li]
        f = jnp.maximum(f, 0.0)
        f = jnp.dot(f.astype(bf16), w2_ref[li],
                    preferred_element_type=jnp.float32) + b2_ref[li]
        h = _layernorm(h + f, ln2_g_ref[li], ln2_b_ref[li])

    # ---- decoder on the last time step: one [Bt, D] @ [D, O] matmul ---------
    h_last = h.reshape(bt, S, D)[:, S - 1, :]                             # [bt, D]
    out = jnp.dot(h_last.astype(bf16), wd_ref[...],
                  preferred_element_type=jnp.float32) + bd_ref[...]       # [bt, O]
    out_ref[:, 0, :] = out


def transformer_forward(x, params, *, nhead, target_rows=256):
    if x.ndim == 2:
        x = x[:, :, None]
    B, S, in_size = x.shape
    O = params["wd"].shape[1]
    num_layers = params["w_in"].shape[0]

    # --- batch tiling: fold Bt batch elements per grid step so matmul rows
    #     M = Bt*S ~ target_rows (256 fills v6e/v7x MXU; >=128 fills v5e).
    bt = max(1, min(B, max(1, target_rows // S)))
    grid = -(-B // bt)
    if grid > 1 and grid % 2 == 1:
        grid += 1                                   # v7x: keep both TCs fed
        bt = -(-B // grid)
    b_pad = grid * bt

    x3 = x.astype(jnp.float32)
    if b_pad != B:
        x3 = jnp.concatenate(
            [x3, jnp.zeros((b_pad - B, S, in_size), jnp.float32)], axis=0)

    def weight_spec(a):
        nd = a.ndim
        return pl.BlockSpec(a.shape, lambda b, _nd=nd: (0,) * _nd)

    kernel = functools.partial(_transformer_kernel,
                               num_layers=num_layers, nhead=nhead)
    out = pl.pallas_call(
        kernel,
        grid=(grid,),
        in_specs=[pl.BlockSpec((bt, S, in_size), lambda b: (b, 0, 0))]
                 + [weight_spec(params[n]) for n in _WEIGHT_ORDER],
        out_specs=pl.BlockSpec((bt, 1, O), lambda b: (b, 0, 0)),
        out_shape=jax.ShapeDtypeStruct((b_pad, 1, O), jnp.float32),
        compiler_params=pltpu.CompilerParams(
            dimension_semantics=("parallel",),      # v7x: split blocks over 2 TCs
            vmem_limit_bytes=64 * 1024 * 1024),
    )(x3, *(params[n] for n in _WEIGHT_ORDER))
    return out.reshape(b_pad, O)[:B]


# ------------------------------ params --------------------------------------

def init_params(key, d_model, nhead, num_layers, input_size, dim_ff, output_size):
    def dense(k, fan_in, fan_out):
        kw, kb = jax.random.split(k)
        w = jax.random.normal(kw, (fan_in, fan_out), jnp.float32) * 0.05
        b = jax.random.normal(kb, (fan_out,), jnp.float32) * 0.05
        return w, b

    bf16 = jnp.bfloat16
    keys = jax.random.split(key, 3 + num_layers)
    we, be = dense(keys[0], input_size, d_model)      # embedding   [in, out]
    wp, bp = dense(keys[1], input_size, d_model)      # pos_encoder Linear
    wd, bd = dense(keys[2], d_model, output_size)     # decoder

    # exact algebraic fold of embedding + pos_encoder (same input to both)
    w_emb = we + wp                                   # f32 (VPU FMA path)
    b_emb = (be + bp).reshape(1, d_model)

    w_in_l, b_in_l, w_out_l, b_out_l = [], [], [], []
    w1_l, b1_l, w2_l, b2_l = [], [], [], []
    for li in range(num_layers):
        lk = jax.random.split(keys[3 + li], 4)
        w_in, b_in = dense(lk[0], d_model, 3 * d_model)    # packed qkv in_proj
        w_out, b_out = dense(lk[1], d_model, d_model)      # attn out_proj
        w1, b1 = dense(lk[2], d_model, dim_ff)             # ffn linear1
        w2, b2 = dense(lk[3], dim_ff, d_model)             # ffn linear2
        w_in_l.append(w_in);   b_in_l.append(b_in.reshape(1, -1))
        w_out_l.append(w_out); b_out_l.append(b_out.reshape(1, -1))
        w1_l.append(w1);       b1_l.append(b1.reshape(1, -1))
        w2_l.append(w2);       b2_l.append(b2.reshape(1, -1))

    L = num_layers
    ones = jnp.ones((L, 1, d_model), jnp.float32)
    zeros = jnp.zeros((L, 1, d_model), jnp.float32)
    return dict(
        w_emb=w_emb, b_emb=b_emb,
        # matmul weights in bf16 (MXU-native); biases / LN params in f32
        w_in=jnp.stack(w_in_l).astype(bf16), b_in=jnp.stack(b_in_l),
        w_out=jnp.stack(w_out_l).astype(bf16), b_out=jnp.stack(b_out_l),
        ln1_g=ones, ln1_b=zeros,
        w1=jnp.stack(w1_l).astype(bf16), b1=jnp.stack(b1_l),
        w2=jnp.stack(w2_l).astype(bf16), b2=jnp.stack(b2_l),
        ln2_g=ones, ln2_b=zeros,
        wd=wd.astype(bf16), bd=bd.reshape(1, -1),
    )


# ------------------------------- main ----------------------------------------

if __name__ == "__main__":
    d_model = 32
    nhead = 4
    num_layers = 2
    input_size = 1
    dim_feedforward = 64
    output_size = 1
    B, S = 2, 8

    key = jax.random.PRNGKey(0)
    kp, kx = jax.random.split(key)
    params = init_params(kp, d_model, nhead, num_layers, input_size,
                         dim_feedforward, output_size)
    x = jax.random.normal(kx, (B, S), jnp.float32)

    fwd = jax.jit(functools.partial(transformer_forward, nhead=nhead))
    out = fwd(x, params)
    jax.block_until_ready(out)
    assert out.shape == (B, output_size), out.shape
    print("KERNEL_OK")
</pallas_src>

<mosaic_0001>
module attributes {stable_mosaic.version = 11 : i64} {
  func.func @_transformer_kernel(%arg0: i32, %arg1: memref<2x8x1xf32, #tpu.memory_space<vmem>>, %arg2: memref<1x32xf32, #tpu.memory_space<vmem>>, %arg3: memref<1x32xf32, #tpu.memory_space<vmem>>, %arg4: memref<2x32x96xbf16, #tpu.memory_space<vmem>>, %arg5: memref<2x1x96xf32, #tpu.memory_space<vmem>>, %arg6: memref<2x32x32xbf16, #tpu.memory_space<vmem>>, %arg7: memref<2x1x32xf32, #tpu.memory_space<vmem>>, %arg8: memref<2x1x32xf32, #tpu.memory_space<vmem>>, %arg9: memref<2x1x32xf32, #tpu.memory_space<vmem>>, %arg10: memref<2x32x64xbf16, #tpu.memory_space<vmem>>, %arg11: memref<2x1x64xf32, #tpu.memory_space<vmem>>, %arg12: memref<2x64x32xbf16, #tpu.memory_space<vmem>>, %arg13: memref<2x1x32xf32, #tpu.memory_space<vmem>>, %arg14: memref<2x1x32xf32, #tpu.memory_space<vmem>>, %arg15: memref<2x1x32xf32, #tpu.memory_space<vmem>>, %arg16: memref<32x1xbf16, #tpu.memory_space<vmem>>, %arg17: memref<1x1xf32, #tpu.memory_space<vmem>>, %arg18: memref<2x1x1xf32, #tpu.memory_space<vmem>>) attributes {dimension_semantics = [#tpu.dimension_semantics<parallel>], iteration_bounds = array<i64: 1>, scalar_prefetch = 0 : i64, scratch_operands = 0 : i64, tpu.core_type = #tpu.core_type<tc>, window_params = [{transform_indices = @transform_0, window_bounds = array<i64: 2, 8, 1>}, {pipeline_mode = #tpu.pipeline_mode<synchronous>, transform_indices = @transform_1, window_bounds = array<i64: 1, 32>}, {pipeline_mode = #tpu.pipeline_mode<synchronous>, transform_indices = @transform_2, window_bounds = array<i64: 1, 32>}, {pipeline_mode = #tpu.pipeline_mode<synchronous>, transform_indices = @transform_3, window_bounds = array<i64: 2, 32, 96>}, {pipeline_mode = #tpu.pipeline_mode<synchronous>, transform_indices = @transform_4, window_bounds = array<i64: 2, 1, 96>}, {pipeline_mode = #tpu.pipeline_mode<synchronous>, transform_indices = @transform_5, window_bounds = array<i64: 2, 32, 32>}, {pipeline_mode = #tpu.pipeline_mode<synchronous>, transform_indices = @transform_6, window_bounds = array<i64: 2, 1, 32>}, {pipeline_mode = #tpu.pipeline_mode<synchronous>, transform_indices = @transform_7, window_bounds = array<i64: 2, 1, 32>}, {pipeline_mode = #tpu.pipeline_mode<synchronous>, transform_indices = @transform_8, window_bounds = array<i64: 2, 1, 32>}, {pipeline_mode = #tpu.pipeline_mode<synchronous>, transform_indices = @transform_9, window_bounds = array<i64: 2, 32, 64>}, {pipeline_mode = #tpu.pipeline_mode<synchronous>, transform_indices = @transform_10, window_bounds = array<i64: 2, 1, 64>}, {pipeline_mode = #tpu.pipeline_mode<synchronous>, transform_indices = @transform_11, window_bounds = array<i64: 2, 64, 32>}, {pipeline_mode = #tpu.pipeline_mode<synchronous>, transform_indices = @transform_12, window_bounds = array<i64: 2, 1, 32>}, {pipeline_mode = #tpu.pipeline_mode<synchronous>, transform_indices = @transform_13, window_bounds = array<i64: 2, 1, 32>}, {pipeline_mode = #tpu.pipeline_mode<synchronous>, transform_indices = @transform_14, window_bounds = array<i64: 2, 1, 32>}, {pipeline_mode = #tpu.pipeline_mode<synchronous>, transform_indices = @transform_15, window_bounds = array<i64: 32, 1>}, {pipeline_mode = #tpu.pipeline_mode<synchronous>, transform_indices = @transform_16, window_bounds = array<i64: 1, 1>}, {transform_indices = @transform_17, window_bounds = array<i64: 2, 1, 1>}]} {
    %c0 = arith.constant 0 : index
    %c0_0 = arith.constant 0 : index
    %c0_1 = arith.constant 0 : index
    %0 = vector.load %arg1[%c0, %c0_0, %c0_1] : memref<2x8x1xf32, #tpu.memory_space<vmem>>, vector<2x8x1xf32>
    %1 = vector.shape_cast %0 : vector<2x8x1xf32> to vector<16x1xf32>
    %c0_2 = arith.constant 0 : index
    %c0_3 = arith.constant 0 : index
    %2 = vector.load %arg2[%c0_2, %c0_3] : memref<1x32xf32, #tpu.memory_space<vmem>>, vector<1x32xf32>
    %3 = vector.broadcast %1 : vector<16x1xf32> to vector<16x32xf32>
    %4 = vector.broadcast %2 : vector<1x32xf32> to vector<16x32xf32>
    %5 = arith.mulf %3, %4 : vector<16x32xf32>
    %c0_4 = arith.constant 0 : index
    %c0_5 = arith.constant 0 : index
    %6 = vector.load %arg3[%c0_4, %c0_5] : memref<1x32xf32, #tpu.memory_space<vmem>>, vector<1x32xf32>
    %7 = vector.broadcast %6 : vector<1x32xf32> to vector<16x32xf32>
    %8 = arith.addf %5, %7 : vector<16x32xf32>
    %9 = arith.truncf %8 : vector<16x32xf32> to vector<16x32xbf16>
    %c0_6 = arith.constant 0 : index
    %c0_7 = arith.constant 0 : index
    %c0_8 = arith.constant 0 : index
    %10 = vector.load %arg4[%c0_6, %c0_7, %c0_8] : memref<2x32x96xbf16, #tpu.memory_space<vmem>>, vector<1x32x96xbf16>
    %11 = vector.shape_cast %10 : vector<1x32x96xbf16> to vector<32x96xbf16>
    %cst = arith.constant dense<0.000000e+00> : vector<16x96xf32>
    %12 = tpu.matmul %9, %11, %cst {dimension_numbers = #tpu.dot_dimension_numbers<[1], [0], [0], [1], [0, 0, 1, 1], [], []>} : vector<16x32xbf16>, vector<32x96xbf16>, vector<16x96xf32> -> vector<16x96xf32>
    %c0_9 = arith.constant 0 : index
    %c0_10 = arith.constant 0 : index
    %c0_11 = arith.constant 0 : index
    %13 = vector.load %arg5[%c0_9, %c0_10, %c0_11] : memref<2x1x96xf32, #tpu.memory_space<vmem>>, vector<1x1x96xf32>
    %14 = vector.shape_cast %13 : vector<1x1x96xf32> to vector<1x96xf32>
    %15 = vector.broadcast %14 : vector<1x96xf32> to vector<16x96xf32>
    %16 = arith.addf %12, %15 : vector<16x96xf32>
    %c0_12 = arith.constant 0 : index
    %c0_13 = arith.constant 0 : index
    %c0_14 = arith.constant 0 : index
    %17 = vector.load %arg6[%c0_12, %c0_13, %c0_14] : memref<2x32x32xbf16, #tpu.memory_space<vmem>>, vector<1x32x32xbf16>
    %18 = vector.shape_cast %17 : vector<1x32x32xbf16> to vector<32x32xbf16>
    %cst_15 = arith.constant 0.000000e+00 : f32
    %19 = vector.broadcast %cst_15 : f32 to vector<16x32xf32>
    %c0_16 = arith.constant 0 : index
    %c0_17 = arith.constant 0 : index
    %c0_18 = arith.constant 0 : index
    %20 = vector.load %arg7[%c0_16, %c0_17, %c0_18] : memref<2x1x32xf32, #tpu.memory_space<vmem>>, vector<1x1x32xf32>
    %21 = vector.shape_cast %20 : vector<1x1x32xf32> to vector<1x32xf32>
    %22 = vector.broadcast %21 : vector<1x32xf32> to vector<16x32xf32>
    %23 = arith.addf %19, %22 : vector<16x32xf32>
    %24 = vector.extract_strided_slice %16 {offsets = [0, 0], sizes = [16, 8], strides = [1, 1]} : vector<16x96xf32> to vector<16x8xf32>
    %25 = vector.shape_cast %24 : vector<16x8xf32> to vector<2x8x8xf32>
    %26 = arith.truncf %25 : vector<2x8x8xf32> to vector<2x8x8xbf16>
    %27 = vector.extract_strided_slice %16 {offsets = [0, 32], sizes = [16, 8], strides = [1, 1]} : vector<16x96xf32> to vector<16x8xf32>
    %28 = vector.shape_cast %27 : vector<16x8xf32> to vector<2x8x8xf32>
    %29 = arith.truncf %28 : vector<2x8x8xf32> to vector<2x8x8xbf16>
    %30 = vector.extract_strided_slice %16 {offsets = [0, 64], sizes = [16, 8], strides = [1, 1]} : vector<16x96xf32> to vector<16x8xf32>
    %31 = vector.shape_cast %30 : vector<16x8xf32> to vector<2x8x8xf32>
    %32 = arith.truncf %31 : vector<2x8x8xf32> to vector<2x8x8xbf16>
    "tpu.trace_start"() <{level = 10 : i32, message = "bqd,bkd->bqk"}> : () -> ()
    %cst_19 = arith.constant dense<0.000000e+00> : vector<2x8x8xf32>
    %33 = tpu.matmul %26, %29, %cst_19 {dimension_numbers = #tpu.dot_dimension_numbers<[2], [2], [1], [1], [0, 0, 0, 1, 1, 1], [0], [0]>} : vector<2x8x8xbf16>, vector<2x8x8xbf16>, vector<2x8x8xf32> -> vector<2x8x8xf32>
    "tpu.trace_stop"() : () -> ()
    %cst_20 = arith.constant 0.353553385 : f32
    %34 = vector.broadcast %cst_20 : f32 to vector<2x8x8xf32>
    %35 = arith.mulf %33, %34 : vector<2x8x8xf32>
    %cst_21 = arith.constant dense<0xFF800000> : vector<2x8xf32>
    %36 = vector.multi_reduction <maximumf>, %35, %cst_21 [2] : vector<2x8x8xf32> to vector<2x8xf32>
    %37 = vector.shape_cast %36 : vector<2x8xf32> to vector<2x8x1xf32>
    %38 = vector.broadcast %37 : vector<2x8x1xf32> to vector<2x8x8xf32>
    %39 = arith.subf %35, %38 : vector<2x8x8xf32>
    %40 = math.exp %39 : vector<2x8x8xf32>
    %cst_22 = arith.constant dense<0.000000e+00> : vector<2x8xf32>
    %41 = vector.multi_reduction <add>, %40, %cst_22 [2] : vector<2x8x8xf32> to vector<2x8xf32>
    %42 = vector.shape_cast %41 : vector<2x8xf32> to vector<2x8x1xf32>
    %43 = tpu.reciprocal %42 {approx = true} : vector<2x8x1xf32> -> vector<2x8x1xf32>
    %44 = vector.broadcast %43 : vector<2x8x1xf32> to vector<2x8x8xf32>
    %45 = arith.mulf %40, %44 : vector<2x8x8xf32>
    %46 = arith.truncf %45 : vector<2x8x8xf32> to vector<2x8x8xbf16>
    "tpu.trace_start"() <{level = 10 : i32, message = "bqk,bkd->bqd"}> : () -> ()
    %cst_23 = arith.constant dense<0.000000e+00> : vector<2x8x8xf32>
    %47 = tpu.matmul %46, %32, %cst_23 {dimension_numbers = #tpu.dot_dimension_numbers<[2], [1], [1], [2], [0, 0, 0, 1, 1, 2], [0], [0]>} : vector<2x8x8xbf16>, vector<2x8x8xbf16>, vector<2x8x8xf32> -> vector<2x8x8xf32>
    "tpu.trace_stop"() : () -> ()
    %48 = vector.shape_cast %47 : vector<2x8x8xf32> to vector<16x8xf32>
    %49 = arith.truncf %48 : vector<16x8xf32> to vector<16x8xbf16>
    %50 = vector.extract_strided_slice %18 {offsets = [0, 0], sizes = [8, 32], strides = [1, 1]} : vector<32x32xbf16> to vector<8x32xbf16>
    %cst_24 = arith.constant dense<0.000000e+00> : vector<16x32xf32>
    %51 = tpu.matmul %49, %50, %cst_24 {dimension_numbers = #tpu.dot_dimension_numbers<[1], [0], [0], [1], [0, 0, 1, 1], [], []>} : vector<16x8xbf16>, vector<8x32xbf16>, vector<16x32xf32> -> vector<16x32xf32>
    %52 = arith.addf %23, %51 : vector<16x32xf32>
    %53 = vector.extract_strided_slice %16 {offsets = [0, 8], sizes = [16, 8], strides = [1, 1]} : vector<16x96xf32> to vector<16x8xf32>
    %54 = vector.shape_cast %53 : vector<16x8xf32> to vector<2x8x8xf32>
    %55 = arith.truncf %54 : vector<2x8x8xf32> to vector<2x8x8xbf16>
    %56 = vector.extract_strided_slice %16 {offsets = [0, 40], sizes = [16, 8], strides = [1, 1]} : vector<16x96xf32> to vector<16x8xf32>
    %57 = vector.shape_cast %56 : vector<16x8xf32> to vector<2x8x8xf32>
    %58 = arith.truncf %57 : vector<2x8x8xf32> to vector<2x8x8xbf16>
    %59 = vector.extract_strided_slice %16 {offsets = [0, 72], sizes = [16, 8], strides = [1, 1]} : vector<16x96xf32> to vector<16x8xf32>
    %60 = vector.shape_cast %59 : vector<16x8xf32> to vector<2x8x8xf32>
    %61 = arith.truncf %60 : vector<2x8x8xf32> to vector<2x8x8xbf16>
    "tpu.trace_start"() <{level = 10 : i32, message = "bqd,bkd->bqk"}> : () -> ()
    %cst_25 = arith.constant dense<0.000000e+00> : vector<2x8x8xf32>
    %62 = tpu.matmul %55, %58, %cst_25 {dimension_numbers = #tpu.dot_dimension_numbers<[2], [2], [1], [1], [0, 0, 0, 1, 1, 1], [0], [0]>} : vector<2x8x8xbf16>, vector<2x8x8xbf16>, vector<2x8x8xf32> -> vector<2x8x8xf32>
    "tpu.trace_stop"() : () -> ()
    %cst_26 = arith.constant 0.353553385 : f32
    %63 = vector.broadcast %cst_26 : f32 to vector<2x8x8xf32>
    %64 = arith.mulf %62, %63 : vector<2x8x8xf32>
    %cst_27 = arith.constant dense<0xFF800000> : vector<2x8xf32>
    %65 = vector.multi_reduction <maximumf>, %64, %cst_27 [2] : vector<2x8x8xf32> to vector<2x8xf32>
    %66 = vector.shape_cast %65 : vector<2x8xf32> to vector<2x8x1xf32>
    %67 = vector.broadcast %66 : vector<2x8x1xf32> to vector<2x8x8xf32>
    %68 = arith.subf %64, %67 : vector<2x8x8xf32>
    %69 = math.exp %68 : vector<2x8x8xf32>
    %cst_28 = arith.constant dense<0.000000e+00> : vector<2x8xf32>
    %70 = vector.multi_reduction <add>, %69, %cst_28 [2] : vector<2x8x8xf32> to vector<2x8xf32>
    %71 = vector.shape_cast %70 : vector<2x8xf32> to vector<2x8x1xf32>
    %72 = tpu.reciprocal %71 {approx = true} : vector<2x8x1xf32> -> vector<2x8x1xf32>
    %73 = vector.broadcast %72 : vector<2x8x1xf32> to vector<2x8x8xf32>
    %74 = arith.mulf %69, %73 : vector<2x8x8xf32>
    %75 = arith.truncf %74 : vector<2x8x8xf32> to vector<2x8x8xbf16>
    "tpu.trace_start"() <{level = 10 : i32, message = "bqk,bkd->bqd"}> : () -> ()
    %cst_29 = arith.constant dense<0.000000e+00> : vector<2x8x8xf32>
    %76 = tpu.matmul %75, %61, %cst_29 {dimension_numbers = #tpu.dot_dimension_numbers<[2], [1], [1], [2], [0, 0, 0, 1, 1, 2], [0], [0]>} : vector<2x8x8xbf16>, vector<2x8x8xbf16>, vector<2x8x8xf32> -> vector<2x8x8xf32>
    "tpu.trace_stop"() : () -> ()
    %77 = vector.shape_cast %76 : vector<2x8x8xf32> to vector<16x8xf32>
    %78 = arith.truncf %77 : vector<16x8xf32> to vector<16x8xbf16>
    %79 = vector.extract_strided_slice %18 {offsets = [8, 0], sizes = [8, 32], strides = [1, 1]} : vector<32x32xbf16> to vector<8x32xbf16>
    %cst_30 = arith.constant dense<0.000000e+00> : vector<16x32xf32>
    %80 = tpu.matmul %78, %79, %cst_30 {dimension_numbers = #tpu.dot_dimension_numbers<[1], [0], [0], [1], [0, 0, 1, 1], [], []>} : vector<16x8xbf16>, vector<8x32xbf16>, vector<16x32xf32> -> vector<16x32xf32>
    %81 = arith.addf %52, %80 : vector<16x32xf32>
    %82 = vector.extract_strided_slice %16 {offsets = [0, 16], sizes = [16, 8], strides = [1, 1]} : vector<16x96xf32> to vector<16x8xf32>
    %83 = vector.shape_cast %82 : vector<16x8xf32> to vector<2x8x8xf32>
    %84 = arith.truncf %83 : vector<2x8x8xf32> to vector<2x8x8xbf16>
    %85 = vector.extract_strided_slice %16 {offsets = [0, 48], sizes = [16, 8], strides = [1, 1]} : vector<16x96xf32> to vector<16x8xf32>
    %86 = vector.shape_cast %85 : vector<16x8xf32> to vector<2x8x8xf32>
    %87 = arith.truncf %86 : vector<2x8x8xf32> to vector<2x8x8xbf16>
    %88 = vector.extract_strided_slice %16 {offsets = [0, 80], sizes = [16, 8], strides = [1, 1]} : vector<16x96xf32> to vector<16x8xf32>
    %89 = vector.shape_cast %88 : vector<16x8xf32> to vector<2x8x8xf32>
    %90 = arith.truncf %89 : vector<2x8x8xf32> to vector<2x8x8xbf16>
    "tpu.trace_start"() <{level = 10 : i32, message = "bqd,bkd->bqk"}> : () -> ()
    %cst_31 = arith.constant dense<0.000000e+00> : vector<2x8x8xf32>
    %91 = tpu.matmul %84, %87, %cst_31 {dimension_numbers = #tpu.dot_dimension_numbers<[2], [2], [1], [1], [0, 0, 0, 1, 1, 1], [0], [0]>} : vector<2x8x8xbf16>, vector<2x8x8xbf16>, vector<2x8x8xf32> -> vector<2x8x8xf32>
    "tpu.trace_stop"() : () -> ()
    %cst_32 = arith.constant 0.353553385 : f32
    %92 = vector.broadcast %cst_32 : f32 to vector<2x8x8xf32>
    %93 = arith.mulf %91, %92 : vector<2x8x8xf32>
    %cst_33 = arith.constant dense<0xFF800000> : vector<2x8xf32>
    %94 = vector.multi_reduction <maximumf>, %93, %cst_33 [2] : vector<2x8x8xf32> to vector<2x8xf32>
    %95 = vector.shape_cast %94 : vector<2x8xf32> to vector<2x8x1xf32>
    %96 = vector.broadcast %95 : vector<2x8x1xf32> to vector<2x8x8xf32>
    %97 = arith.subf %93, %96 : vector<2x8x8xf32>
    %98 = math.exp %97 : vector<2x8x8xf32>
    %cst_34 = arith.constant dense<0.000000e+00> : vector<2x8xf32>
    %99 = vector.multi_reduction <add>, %98, %cst_34 [2] : vector<2x8x8xf32> to vector<2x8xf32>
    %100 = vector.shape_cast %99 : vector<2x8xf32> to vector<2x8x1xf32>
    %101 = tpu.reciprocal %100 {approx = true} : vector<2x8x1xf32> -> vector<2x8x1xf32>
    %102 = vector.broadcast %101 : vector<2x8x1xf32> to vector<2x8x8xf32>
    %103 = arith.mulf %98, %102 : vector<2x8x8xf32>
    %104 = arith.truncf %103 : vector<2x8x8xf32> to vector<2x8x8xbf16>
    "tpu.trace_start"() <{level = 10 : i32, message = "bqk,bkd->bqd"}> : () -> ()
    %cst_35 = arith.constant dense<0.000000e+00> : vector<2x8x8xf32>
    %105 = tpu.matmul %104, %90, %cst_35 {dimension_numbers = #tpu.dot_dimension_numbers<[2], [1], [1], [2], [0, 0, 0, 1, 1, 2], [0], [0]>} : vector<2x8x8xbf16>, vector<2x8x8xbf16>, vector<2x8x8xf32> -> vector<2x8x8xf32>
    "tpu.trace_stop"() : () -> ()
    %106 = vector.shape_cast %105 : vector<2x8x8xf32> to vector<16x8xf32>
    %107 = arith.truncf %106 : vector<16x8xf32> to vector<16x8xbf16>
    %108 = vector.extract_strided_slice %18 {offsets = [16, 0], sizes = [8, 32], strides = [1, 1]} : vector<32x32xbf16> to vector<8x32xbf16>
    %cst_36 = arith.constant dense<0.000000e+00> : vector<16x32xf32>
    %109 = tpu.matmul %107, %108, %cst_36 {dimension_numbers = #tpu.dot_dimension_numbers<[1], [0], [0], [1], [0, 0, 1, 1], [], []>} : vector<16x8xbf16>, vector<8x32xbf16>, vector<16x32xf32> -> vector<16x32xf32>
    %110 = arith.addf %81, %109 : vector<16x32xf32>
    %111 = vector.extract_strided_slice %16 {offsets = [0, 24], sizes = [16, 8], strides = [1, 1]} : vector<16x96xf32> to vector<16x8xf32>
    %112 = vector.shape_cast %111 : vector<16x8xf32> to vector<2x8x8xf32>
    %113 = arith.truncf %112 : vector<2x8x8xf32> to vector<2x8x8xbf16>
    %114 = vector.extract_strided_slice %16 {offsets = [0, 56], sizes = [16, 8], strides = [1, 1]} : vector<16x96xf32> to vector<16x8xf32>
    %115 = vector.shape_cast %114 : vector<16x8xf32> to vector<2x8x8xf32>
    %116 = arith.truncf %115 : vector<2x8x8xf32> to vector<2x8x8xbf16>
    %117 = vector.extract_strided_slice %16 {offsets = [0, 88], sizes = [16, 8], strides = [1, 1]} : vector<16x96xf32> to vector<16x8xf32>
    %118 = vector.shape_cast %117 : vector<16x8xf32> to vector<2x8x8xf32>
    %119 = arith.truncf %118 : vector<2x8x8xf32> to vector<2x8x8xbf16>
    "tpu.trace_start"() <{level = 10 : i32, message = "bqd,bkd->bqk"}> : () -> ()
    %cst_37 = arith.constant dense<0.000000e+00> : vector<2x8x8xf32>
    %120 = tpu.matmul %113, %116, %cst_37 {dimension_numbers = #tpu.dot_dimension_numbers<[2], [2], [1], [1], [0, 0, 0, 1, 1, 1], [0], [0]>} : vector<2x8x8xbf16>, vector<2x8x8xbf16>, vector<2x8x8xf32> -> vector<2x8x8xf32>
    "tpu.trace_stop"() : () -> ()
    %cst_38 = arith.constant 0.353553385 : f32
    %121 = vector.broadcast %cst_38 : f32 to vector<2x8x8xf32>
    %122 = arith.mulf %120, %121 : vector<2x8x8xf32>
    %cst_39 = arith.constant dense<0xFF800000> : vector<2x8xf32>
    %123 = vector.multi_reduction <maximumf>, %122, %cst_39 [2] : vector<2x8x8xf32> to vector<2x8xf32>
    %124 = vector.shape_cast %123 : vector<2x8xf32> to vector<2x8x1xf32>
    %125 = vector.broadcast %124 : vector<2x8x1xf32> to vector<2x8x8xf32>
    %126 = arith.subf %122, %125 : vector<2x8x8xf32>
    %127 = math.exp %126 : vector<2x8x8xf32>
    %cst_40 = arith.constant dense<0.000000e+00> : vector<2x8xf32>
    %128 = vector.multi_reduction <add>, %127, %cst_40 [2] : vector<2x8x8xf32> to vector<2x8xf32>
    %129 = vector.shape_cast %128 : vector<2x8xf32> to vector<2x8x1xf32>
    %130 = tpu.reciprocal %129 {approx = true} : vector<2x8x1xf32> -> vector<2x8x1xf32>
    %131 = vector.broadcast %130 : vector<2x8x1xf32> to vector<2x8x8xf32>
    %132 = arith.mulf %127, %131 : vector<2x8x8xf32>
    %133 = arith.truncf %132 : vector<2x8x8xf32> to vector<2x8x8xbf16>
    "tpu.trace_start"() <{level = 10 : i32, message = "bqk,bkd->bqd"}> : () -> ()
    %cst_41 = arith.constant dense<0.000000e+00> : vector<2x8x8xf32>
    %134 = tpu.matmul %133, %119, %cst_41 {dimension_numbers = #tpu.dot_dimension_numbers<[2], [1], [1], [2], [0, 0, 0, 1, 1, 2], [0], [0]>} : vector<2x8x8xbf16>, vector<2x8x8xbf16>, vector<2x8x8xf32> -> vector<2x8x8xf32>
    "tpu.trace_stop"() : () -> ()
    %135 = vector.shape_cast %134 : vector<2x8x8xf32> to vector<16x8xf32>
    %136 = arith.truncf %135 : vector<16x8xf32> to vector<16x8xbf16>
    %137 = vector.extract_strided_slice %18 {offsets = [24, 0], sizes = [8, 32], strides = [1, 1]} : vector<32x32xbf16> to vector<8x32xbf16>
    %cst_42 = arith.constant dense<0.000000e+00> : vector<16x32xf32>
    %138 = tpu.matmul %136, %137, %cst_42 {dimension_numbers = #tpu.dot_dimension_numbers<[1], [0], [0], [1], [0, 0, 1, 1], [], []>} : vector<16x8xbf16>, vector<8x32xbf16>, vector<16x32xf32> -> vector<16x32xf32>
    %139 = arith.addf %110, %138 : vector<16x32xf32>
    %140 = arith.addf %8, %139 : vector<16x32xf32>
    %c0_43 = arith.constant 0 : index
    %c0_44 = arith.constant 0 : index
    %c0_45 = arith.constant 0 : index
    %141 = vector.load %arg8[%c0_43, %c0_44, %c0_45] : memref<2x1x32xf32, #tpu.memory_space<vmem>>, vector<1x1x32xf32>
    %142 = vector.shape_cast %141 : vector<1x1x32xf32> to vector<1x32xf32>
    %c0_46 = arith.constant 0 : index
    %c0_47 = arith.constant 0 : index
    %c0_48 = arith.constant 0 : index
    %143 = vector.load %arg9[%c0_46, %c0_47, %c0_48] : memref<2x1x32xf32, #tpu.memory_space<vmem>>, vector<1x1x32xf32>
    %144 = vector.shape_cast %143 : vector<1x1x32xf32> to vector<1x32xf32>
    %cst_49 = arith.constant dense<0.000000e+00> : vector<16xf32>
    %145 = vector.multi_reduction <add>, %140, %cst_49 [1] : vector<16x32xf32> to vector<16xf32>
    %146 = vector.shape_cast %145 : vector<16xf32> to vector<16x1xf32>
    %cst_50 = arith.constant 3.200000e+01 : f32
    %147 = vector.broadcast %cst_50 : f32 to vector<16x1xf32>
    %148 = arith.divf %146, %147 : vector<16x1xf32>
    %149 = vector.broadcast %148 : vector<16x1xf32> to vector<16x32xf32>
    %150 = arith.subf %140, %149 : vector<16x32xf32>
    %151 = arith.mulf %150, %150 : vector<16x32xf32>
    %cst_51 = arith.constant dense<0.000000e+00> : vector<16xf32>
    %152 = vector.multi_reduction <add>, %151, %cst_51 [1] : vector<16x32xf32> to vector<16xf32>
    %153 = vector.shape_cast %152 : vector<16xf32> to vector<16x1xf32>
    %cst_52 = arith.constant 3.200000e+01 : f32
    %154 = vector.broadcast %cst_52 : f32 to vector<16x1xf32>
    %155 = arith.divf %153, %154 : vector<16x1xf32>
    %156 = vector.broadcast %148 : vector<16x1xf32> to vector<16x32xf32>
    %157 = arith.subf %140, %156 : vector<16x32xf32>
    %cst_53 = arith.constant 9.99999974E-6 : f32
    %158 = vector.broadcast %cst_53 : f32 to vector<16x1xf32>
    %159 = arith.addf %155, %158 : vector<16x1xf32>
    %160 = math.rsqrt %159 : vector<16x1xf32>
    %161 = vector.broadcast %160 : vector<16x1xf32> to vector<16x32xf32>
    %162 = arith.mulf %157, %161 : vector<16x32xf32>
    %163 = vector.broadcast %142 : vector<1x32xf32> to vector<16x32xf32>
    %164 = arith.mulf %162, %163 : vector<16x32xf32>
    %165 = vector.broadcast %144 : vector<1x32xf32> to vector<16x32xf32>
    %166 = arith.addf %164, %165 : vector<16x32xf32>
    %167 = arith.truncf %166 : vector<16x32xf32> to vector<16x32xbf16>
    %c0_54 = arith.constant 0 : index
    %c0_55 = arith.constant 0 : index
    %c0_56 = arith.constant 0 : index
    %168 = vector.load %arg10[%c0_54, %c0_55, %c0_56] : memref<2x32x64xbf16, #tpu.memory_space<vmem>>, vector<1x32x64xbf16>
    %169 = vector.shape_cast %168 : vector<1x32x64xbf16> to vector<32x64xbf16>
    %cst_57 = arith.constant dense<0.000000e+00> : vector<16x64xf32>
    %170 = tpu.matmul %167, %169, %cst_57 {dimension_numbers = #tpu.dot_dimension_numbers<[1], [0], [0], [1], [0, 0, 1, 1], [], []>} : vector<16x32xbf16>, vector<32x64xbf16>, vector<16x64xf32> -> vector<16x64xf32>
    %c0_58 = arith.constant 0 : index
    %c0_59 = arith.constant 0 : index
    %c0_60 = arith.constant 0 : index
    %171 = vector.load %arg11[%c0_58, %c0_59, %c0_60] : memref<2x1x64xf32, #tpu.memory_space<vmem>>, vector<1x1x64xf32>
    %172 = vector.shape_cast %171 : vector<1x1x64xf32> to vector<1x64xf32>
    %173 = vector.broadcast %172 : vector<1x64xf32> to vector<16x64xf32>
    %174 = arith.addf %170, %173 : vector<16x64xf32>
    %cst_61 = arith.constant 0.000000e+00 : f32
    %175 = vector.broadcast %cst_61 : f32 to vector<16x64xf32>
    %176 = arith.maximumf %174, %175 : vector<16x64xf32>
    %177 = arith.truncf %176 : vector<16x64xf32> to vector<16x64xbf16>
    %c0_62 = arith.constant 0 : index
    %c0_63 = arith.constant 0 : index
    %c0_64 = arith.constant 0 : index
    %178 = vector.load %arg12[%c0_62, %c0_63, %c0_64] : memref<2x64x32xbf16, #tpu.memory_space<vmem>>, vector<1x64x32xbf16>
    %179 = vector.shape_cast %178 : vector<1x64x32xbf16> to vector<64x32xbf16>
    %cst_65 = arith.constant dense<0.000000e+00> : vector<16x32xf32>
    %180 = tpu.matmul %177, %179, %cst_65 {dimension_numbers = #tpu.dot_dimension_numbers<[1], [0], [0], [1], [0, 0, 1, 1], [], []>} : vector<16x64xbf16>, vector<64x32xbf16>, vector<16x32xf32> -> vector<16x32xf32>
    %c0_66 = arith.constant 0 : index
    %c0_67 = arith.constant 0 : index
    %c0_68 = arith.constant 0 : index
    %181 = vector.load %arg13[%c0_66, %c0_67, %c0_68] : memref<2x1x32xf32, #tpu.memory_space<vmem>>, vector<1x1x32xf32>
    %182 = vector.shape_cast %181 : vector<1x1x32xf32> to vector<1x32xf32>
    %183 = vector.broadcast %182 : vector<1x32xf32> to vector<16x32xf32>
    %184 = arith.addf %180, %183 : vector<16x32xf32>
    %185 = arith.addf %166, %184 : vector<16x32xf32>
    %c0_69 = arith.constant 0 : index
    %c0_70 = arith.constant 0 : index
    %c0_71 = arith.constant 0 : index
    %186 = vector.load %arg14[%c0_69, %c0_70, %c0_71] : memref<2x1x32xf32, #tpu.memory_space<vmem>>, vector<1x1x32xf32>
    %187 = vector.shape_cast %186 : vector<1x1x32xf32> to vector<1x32xf32>
    %c0_72 = arith.constant 0 : index
    %c0_73 = arith.constant 0 : index
    %c0_74 = arith.constant 0 : index
    %188 = vector.load %arg15[%c0_72, %c0_73, %c0_74] : memref<2x1x32xf32, #tpu.memory_space<vmem>>, vector<1x1x32xf32>
    %189 = vector.shape_cast %188 : vector<1x1x32xf32> to vector<1x32xf32>
    %cst_75 = arith.constant dense<0.000000e+00> : vector<16xf32>
    %190 = vector.multi_reduction <add>, %185, %cst_75 [1] : vector<16x32xf32> to vector<16xf32>
    %191 = vector.shape_cast %190 : vector<16xf32> to vector<16x1xf32>
    %cst_76 = arith.constant 3.200000e+01 : f32
    %192 = vector.broadcast %cst_76 : f32 to vector<16x1xf32>
    %193 = arith.divf %191, %192 : vector<16x1xf32>
    %194 = vector.broadcast %193 : vector<16x1xf32> to vector<16x32xf32>
    %195 = arith.subf %185, %194 : vector<16x32xf32>
    %196 = arith.mulf %195, %195 : vector<16x32xf32>
    %cst_77 = arith.constant dense<0.000000e+00> : vector<16xf32>
    %197 = vector.multi_reduction <add>, %196, %cst_77 [1] : vector<16x32xf32> to vector<16xf32>
    %198 = vector.shape_cast %197 : vector<16xf32> to vector<16x1xf32>
    %cst_78 = arith.constant 3.200000e+01 : f32
    %199 = vector.broadcast %cst_78 : f32 to vector<16x1xf32>
    %200 = arith.divf %198, %199 : vector<16x1xf32>
    %201 = vector.broadcast %193 : vector<16x1xf32> to vector<16x32xf32>
    %202 = arith.subf %185, %201 : vector<16x32xf32>
    %cst_79 = arith.constant 9.99999974E-6 : f32
    %203 = vector.broadcast %cst_79 : f32 to vector<16x1xf32>
    %204 = arith.addf %200, %203 : vector<16x1xf32>
    %205 = math.rsqrt %204 : vector<16x1xf32>
    %206 = vector.broadcast %205 : vector<16x1xf32> to vector<16x32xf32>
    %207 = arith.mulf %202, %206 : vector<16x32xf32>
    %208 = vector.broadcast %187 : vector<1x32xf32> to vector<16x32xf32>
    %209 = arith.mulf %207, %208 : vector<16x32xf32>
    %210 = vector.broadcast %189 : vector<1x32xf32> to vector<16x32xf32>
    %211 = arith.addf %209, %210 : vector<16x32xf32>
    %212 = arith.truncf %211 : vector<16x32xf32> to vector<16x32xbf16>
    %c1 = arith.constant 1 : index
    %c0_80 = arith.constant 0 : index
    %c0_81 = arith.constant 0 : index
    %213 = vector.load %arg4[%c1, %c0_80, %c0_81] : memref<2x32x96xbf16, #tpu.memory_space<vmem>>, vector<1x32x96xbf16>
    %214 = vector.shape_cast %213 : vector<1x32x96xbf16> to vector<32x96xbf16>
    %cst_82 = arith.constant dense<0.000000e+00> : vector<16x96xf32>
    %215 = tpu.matmul %212, %214, %cst_82 {dimension_numbers = #tpu.dot_dimension_numbers<[1], [0], [0], [1], [0, 0, 1, 1], [], []>} : vector<16x32xbf16>, vector<32x96xbf16>, vector<16x96xf32> -> vector<16x96xf32>
    %c1_83 = arith.constant 1 : index
    %c0_84 = arith.constant 0 : index
    %c0_85 = arith.constant 0 : index
    %216 = vector.load %arg5[%c1_83, %c0_84, %c0_85] : memref<2x1x96xf32, #tpu.memory_space<vmem>>, vector<1x1x96xf32>
    %217 = vector.shape_cast %216 : vector<1x1x96xf32> to vector<1x96xf32>
    %218 = vector.broadcast %217 : vector<1x96xf32> to vector<16x96xf32>
    %219 = arith.addf %215, %218 : vector<16x96xf32>
    %c1_86 = arith.constant 1 : index
    %c0_87 = arith.constant 0 : index
    %c0_88 = arith.constant 0 : index
    %220 = vector.load %arg6[%c1_86, %c0_87, %c0_88] : memref<2x32x32xbf16, #tpu.memory_space<vmem>>, vector<1x32x32xbf16>
    %221 = vector.shape_cast %220 : vector<1x32x32xbf16> to vector<32x32xbf16>
    %cst_89 = arith.constant 0.000000e+00 : f32
    %222 = vector.broadcast %cst_89 : f32 to vector<16x32xf32>
    %c1_90 = arith.constant 1 : index
    %c0_91 = arith.constant 0 : index
    %c0_92 = arith.constant 0 : index
    %223 = vector.load %arg7[%c1_90, %c0_91, %c0_92] : memref<2x1x32xf32, #tpu.memory_space<vmem>>, vector<1x1x32xf32>
    %224 = vector.shape_cast %223 : vector<1x1x32xf32> to vector<1x32xf32>
    %225 = vector.broadcast %224 : vector<1x32xf32> to vector<16x32xf32>
    %226 = arith.addf %222, %225 : vector<16x32xf32>
    %227 = vector.extract_strided_slice %219 {offsets = [0, 0], sizes = [16, 8], strides = [1, 1]} : vector<16x96xf32> to vector<16x8xf32>
    %228 = vector.shape_cast %227 : vector<16x8xf32> to vector<2x8x8xf32>
    %229 = arith.truncf %228 : vector<2x8x8xf32> to vector<2x8x8xbf16>
    %230 = vector.extract_strided_slice %219 {offsets = [0, 32], sizes = [16, 8], strides = [1, 1]} : vector<16x96xf32> to vector<16x8xf32>
    %231 = vector.shape_cast %230 : vector<16x8xf32> to vector<2x8x8xf32>
    %232 = arith.truncf %231 : vector<2x8x8xf32> to vector<2x8x8xbf16>
    %233 = vector.extract_strided_slice %219 {offsets = [0, 64], sizes = [16, 8], strides = [1, 1]} : vector<16x96xf32> to vector<16x8xf32>
    %234 = vector.shape_cast %233 : vector<16x8xf32> to vector<2x8x8xf32>
    %235 = arith.truncf %234 : vector<2x8x8xf32> to vector<2x8x8xbf16>
    "tpu.trace_start"() <{level = 10 : i32, message = "bqd,bkd->bqk"}> : () -> ()
    %cst_93 = arith.constant dense<0.000000e+00> : vector<2x8x8xf32>
    %236 = tpu.matmul %229, %232, %cst_93 {dimension_numbers = #tpu.dot_dimension_numbers<[2], [2], [1], [1], [0, 0, 0, 1, 1, 1], [0], [0]>} : vector<2x8x8xbf16>, vector<2x8x8xbf16>, vector<2x8x8xf32> -> vector<2x8x8xf32>
    "tpu.trace_stop"() : () -> ()
    %cst_94 = arith.constant 0.353553385 : f32
    %237 = vector.broadcast %cst_94 : f32 to vector<2x8x8xf32>
    %238 = arith.mulf %236, %237 : vector<2x8x8xf32>
    %cst_95 = arith.constant dense<0xFF800000> : vector<2x8xf32>
    %239 = vector.multi_reduction <maximumf>, %238, %cst_95 [2] : vector<2x8x8xf32> to vector<2x8xf32>
    %240 = vector.shape_cast %239 : vector<2x8xf32> to vector<2x8x1xf32>
    %241 = vector.broadcast %240 : vector<2x8x1xf32> to vector<2x8x8xf32>
    %242 = arith.subf %238, %241 : vector<2x8x8xf32>
    %243 = math.exp %242 : vector<2x8x8xf32>
    %cst_96 = arith.constant dense<0.000000e+00> : vector<2x8xf32>
    %244 = vector.multi_reduction <add>, %243, %cst_96 [2] : vector<2x8x8xf32> to vector<2x8xf32>
    %245 = vector.shape_cast %244 : vector<2x8xf32> to vector<2x8x1xf32>
    %246 = tpu.reciprocal %245 {approx = true} : vector<2x8x1xf32> -> vector<2x8x1xf32>
    %247 = vector.broadcast %246 : vector<2x8x1xf32> to vector<2x8x8xf32>
    %248 = arith.mulf %243, %247 : vector<2x8x8xf32>
    %249 = arith.truncf %248 : vector<2x8x8xf32> to vector<2x8x8xbf16>
    "tpu.trace_start"() <{level = 10 : i32, message = "bqk,bkd->bqd"}> : () -> ()
    %cst_97 = arith.constant dense<0.000000e+00> : vector<2x8x8xf32>
    %250 = tpu.matmul %249, %235, %cst_97 {dimension_numbers = #tpu.dot_dimension_numbers<[2], [1], [1], [2], [0, 0, 0, 1, 1, 2], [0], [0]>} : vector<2x8x8xbf16>, vector<2x8x8xbf16>, vector<2x8x8xf32> -> vector<2x8x8xf32>
    "tpu.trace_stop"() : () -> ()
    %251 = vector.shape_cast %250 : vector<2x8x8xf32> to vector<16x8xf32>
    %252 = arith.truncf %251 : vector<16x8xf32> to vector<16x8xbf16>
    %253 = vector.extract_strided_slice %221 {offsets = [0, 0], sizes = [8, 32], strides = [1, 1]} : vector<32x32xbf16> to vector<8x32xbf16>
    %cst_98 = arith.constant dense<0.000000e+00> : vector<16x32xf32>
    %254 = tpu.matmul %252, %253, %cst_98 {dimension_numbers = #tpu.dot_dimension_numbers<[1], [0], [0], [1], [0, 0, 1, 1], [], []>} : vector<16x8xbf16>, vector<8x32xbf16>, vector<16x32xf32> -> vector<16x32xf32>
    %255 = arith.addf %226, %254 : vector<16x32xf32>
    %256 = vector.extract_strided_slice %219 {offsets = [0, 8], sizes = [16, 8], strides = [1, 1]} : vector<16x96xf32> to vector<16x8xf32>
    %257 = vector.shape_cast %256 : vector<16x8xf32> to vector<2x8x8xf32>
    %258 = arith.truncf %257 : vector<2x8x8xf32> to vector<2x8x8xbf16>
    %259 = vector.extract_strided_slice %219 {offsets = [0, 40], sizes = [16, 8], strides = [1, 1]} : vector<16x96xf32> to vector<16x8xf32>
    %260 = vector.shape_cast %259 : vector<16x8xf32> to vector<2x8x8xf32>
    %261 = arith.truncf %260 : vector<2x8x8xf32> to vector<2x8x8xbf16>
    %262 = vector.extract_strided_slice %219 {offsets = [0, 72], sizes = [16, 8], strides = [1, 1]} : vector<16x96xf32> to vector<16x8xf32>
    %263 = vector.shape_cast %262 : vector<16x8xf32> to vector<2x8x8xf32>
    %264 = arith.truncf %263 : vector<2x8x8xf32> to vector<2x8x8xbf16>
    "tpu.trace_start"() <{level = 10 : i32, message = "bqd,bkd->bqk"}> : () -> ()
    %cst_99 = arith.constant dense<0.000000e+00> : vector<2x8x8xf32>
    %265 = tpu.matmul %258, %261, %cst_99 {dimension_numbers = #tpu.dot_dimension_numbers<[2], [2], [1], [1], [0, 0, 0, 1, 1, 1], [0], [0]>} : vector<2x8x8xbf16>, vector<2x8x8xbf16>, vector<2x8x8xf32> -> vector<2x8x8xf32>
    "tpu.trace_stop"() : () -> ()
    %cst_100 = arith.constant 0.353553385 : f32
    %266 = vector.broadcast %cst_100 : f32 to vector<2x8x8xf32>
    %267 = arith.mulf %265, %266 : vector<2x8x8xf32>
    %cst_101 = arith.constant dense<0xFF800000> : vector<2x8xf32>
    %268 = vector.multi_reduction <maximumf>, %267, %cst_101 [2] : vector<2x8x8xf32> to vector<2x8xf32>
    %269 = vector.shape_cast %268 : vector<2x8xf32> to vector<2x8x1xf32>
    %270 = vector.broadcast %269 : vector<2x8x1xf32> to vector<2x8x8xf32>
    %271 = arith.subf %267, %270 : vector<2x8x8xf32>
    %272 = math.exp %271 : vector<2x8x8xf32>
    %cst_102 = arith.constant dense<0.000000e+00> : vector<2x8xf32>
    %273 = vector.multi_reduction <add>, %272, %cst_102 [2] : vector<2x8x8xf32> to vector<2x8xf32>
    %274 = vector.shape_cast %273 : vector<2x8xf32> to vector<2x8x1xf32>
    %275 = tpu.reciprocal %274 {approx = true} : vector<2x8x1xf32> -> vector<2x8x1xf32>
    %276 = vector.broadcast %275 : vector<2x8x1xf32> to vector<2x8x8xf32>
    %277 = arith.mulf %272, %276 : vector<2x8x8xf32>
    %278 = arith.truncf %277 : vector<2x8x8xf32> to vector<2x8x8xbf16>
    "tpu.trace_start"() <{level = 10 : i32, message = "bqk,bkd->bqd"}> : () -> ()
    %cst_103 = arith.constant dense<0.000000e+00> : vector<2x8x8xf32>
    %279 = tpu.matmul %278, %264, %cst_103 {dimension_numbers = #tpu.dot_dimension_numbers<[2], [1], [1], [2], [0, 0, 0, 1, 1, 2], [0], [0]>} : vector<2x8x8xbf16>, vector<2x8x8xbf16>, vector<2x8x8xf32> -> vector<2x8x8xf32>
    "tpu.trace_stop"() : () -> ()
    %280 = vector.shape_cast %279 : vector<2x8x8xf32> to vector<16x8xf32>
    %281 = arith.truncf %280 : vector<16x8xf32> to vector<16x8xbf16>
    %282 = vector.extract_strided_slice %221 {offsets = [8, 0], sizes = [8, 32], strides = [1, 1]} : vector<32x32xbf16> to vector<8x32xbf16>
    %cst_104 = arith.constant dense<0.000000e+00> : vector<16x32xf32>
    %283 = tpu.matmul %281, %282, %cst_104 {dimension_numbers = #tpu.dot_dimension_numbers<[1], [0], [0], [1], [0, 0, 1, 1], [], []>} : vector<16x8xbf16>, vector<8x32xbf16>, vector<16x32xf32> -> vector<16x32xf32>
    %284 = arith.addf %255, %283 : vector<16x32xf32>
    %285 = vector.extract_strided_slice %219 {offsets = [0, 16], sizes = [16, 8], strides = [1, 1]} : vector<16x96xf32> to vector<16x8xf32>
    %286 = vector.shape_cast %285 : vector<16x8xf32> to vector<2x8x8xf32>
    %287 = arith.truncf %286 : vector<2x8x8xf32> to vector<2x8x8xbf16>
    %288 = vector.extract_strided_slice %219 {offsets = [0, 48], sizes = [16, 8], strides = [1, 1]} : vector<16x96xf32> to vector<16x8xf32>
    %289 = vector.shape_cast %288 : vector<16x8xf32> to vector<2x8x8xf32>
    %290 = arith.truncf %289 : vector<2x8x8xf32> to vector<2x8x8xbf16>
    %291 = vector.extract_strided_slice %219 {offsets = [0, 80], sizes = [16, 8], strides = [1, 1]} : vector<16x96xf32> to vector<16x8xf32>
    %292 = vector.shape_cast %291 : vector<16x8xf32> to vector<2x8x8xf32>
    %293 = arith.truncf %292 : vector<2x8x8xf32> to vector<2x8x8xbf16>
    "tpu.trace_start"() <{level = 10 : i32, message = "bqd,bkd->bqk"}> : () -> ()
    %cst_105 = arith.constant dense<0.000000e+00> : vector<2x8x8xf32>
    %294 = tpu.matmul %287, %290, %cst_105 {dimension_numbers = #tpu.dot_dimension_numbers<[2], [2], [1], [1], [0, 0, 0, 1, 1, 1], [0], [0]>} : vector<2x8x8xbf16>, vector<2x8x8xbf16>, vector<2x8x8xf32> -> vector<2x8x8xf32>
    "tpu.trace_stop"() : () -> ()
    %cst_106 = arith.constant 0.353553385 : f32
    %295 = vector.broadcast %cst_106 : f32 to vector<2x8x8xf32>
    %296 = arith.mulf %294, %295 : vector<2x8x8xf32>
    %cst_107 = arith.constant dense<0xFF800000> : vector<2x8xf32>
    %297 = vector.multi_reduction <maximumf>, %296, %cst_107 [2] : vector<2x8x8xf32> to vector<2x8xf32>
    %298 = vector.shape_cast %297 : vector<2x8xf32> to vector<2x8x1xf32>
    %299 = vector.broadcast %298 : vector<2x8x1xf32> to vector<2x8x8xf32>
    %300 = arith.subf %296, %299 : vector<2x8x8xf32>
    %301 = math.exp %300 : vector<2x8x8xf32>
    %cst_108 = arith.constant dense<0.000000e+00> : vector<2x8xf32>
    %302 = vector.multi_reduction <add>, %301, %cst_108 [2] : vector<2x8x8xf32> to vector<2x8xf32>
    %303 = vector.shape_cast %302 : vector<2x8xf32> to vector<2x8x1xf32>
    %304 = tpu.reciprocal %303 {approx = true} : vector<2x8x1xf32> -> vector<2x8x1xf32>
    %305 = vector.broadcast %304 : vector<2x8x1xf32> to vector<2x8x8xf32>
    %306 = arith.mulf %301, %305 : vector<2x8x8xf32>
    %307 = arith.truncf %306 : vector<2x8x8xf32> to vector<2x8x8xbf16>
    "tpu.trace_start"() <{level = 10 : i32, message = "bqk,bkd->bqd"}> : () -> ()
    %cst_109 = arith.constant dense<0.000000e+00> : vector<2x8x8xf32>
    %308 = tpu.matmul %307, %293, %cst_109 {dimension_numbers = #tpu.dot_dimension_numbers<[2], [1], [1], [2], [0, 0, 0, 1, 1, 2], [0], [0]>} : vector<2x8x8xbf16>, vector<2x8x8xbf16>, vector<2x8x8xf32> -> vector<2x8x8xf32>
    "tpu.trace_stop"() : () -> ()
    %309 = vector.shape_cast %308 : vector<2x8x8xf32> to vector<16x8xf32>
    %310 = arith.truncf %309 : vector<16x8xf32> to vector<16x8xbf16>
    %311 = vector.extract_strided_slice %221 {offsets = [16, 0], sizes = [8, 32], strides = [1, 1]} : vector<32x32xbf16> to vector<8x32xbf16>
    %cst_110 = arith.constant dense<0.000000e+00> : vector<16x32xf32>
    %312 = tpu.matmul %310, %311, %cst_110 {dimension_numbers = #tpu.dot_dimension_numbers<[1], [0], [0], [1], [0, 0, 1, 1], [], []>} : vector<16x8xbf16>, vector<8x32xbf16>, vector<16x32xf32> -> vector<16x32xf32>
    %313 = arith.addf %284, %312 : vector<16x32xf32>
    %314 = vector.extract_strided_slice %219 {offsets = [0, 24], sizes = [16, 8], strides = [1, 1]} : vector<16x96xf32> to vector<16x8xf32>
    %315 = vector.shape_cast %314 : vector<16x8xf32> to vector<2x8x8xf32>
    %316 = arith.truncf %315 : vector<2x8x8xf32> to vector<2x8x8xbf16>
    %317 = vector.extract_strided_slice %219 {offsets = [0, 56], sizes = [16, 8], strides = [1, 1]} : vector<16x96xf32> to vector<16x8xf32>
    %318 = vector.shape_cast %317 : vector<16x8xf32> to vector<2x8x8xf32>
    %319 = arith.truncf %318 : vector<2x8x8xf32> to vector<2x8x8xbf16>
    %320 = vector.extract_strided_slice %219 {offsets = [0, 88], sizes = [16, 8], strides = [1, 1]} : vector<16x96xf32> to vector<16x8xf32>
    %321 = vector.shape_cast %320 : vector<16x8xf32> to vector<2x8x8xf32>
    %322 = arith.truncf %321 : vector<2x8x8xf32> to vector<2x8x8xbf16>
    "tpu.trace_start"() <{level = 10 : i32, message = "bqd,bkd->bqk"}> : () -> ()
    %cst_111 = arith.constant dense<0.000000e+00> : vector<2x8x8xf32>
    %323 = tpu.matmul %316, %319, %cst_111 {dimension_numbers = #tpu.dot_dimension_numbers<[2], [2], [1], [1], [0, 0, 0, 1, 1, 1], [0], [0]>} : vector<2x8x8xbf16>, vector<2x8x8xbf16>, vector<2x8x8xf32> -> vector<2x8x8xf32>
    "tpu.trace_stop"() : () -> ()
    %cst_112 = arith.constant 0.353553385 : f32
    %324 = vector.broadcast %cst_112 : f32 to vector<2x8x8xf32>
    %325 = arith.mulf %323, %324 : vector<2x8x8xf32>
    %cst_113 = arith.constant dense<0xFF800000> : vector<2x8xf32>
    %326 = vector.multi_reduction <maximumf>, %325, %cst_113 [2] : vector<2x8x8xf32> to vector<2x8xf32>
    %327 = vector.shape_cast %326 : vector<2x8xf32> to vector<2x8x1xf32>
    %328 = vector.broadcast %327 : vector<2x8x1xf32> to vector<2x8x8xf32>
    %329 = arith.subf %325, %328 : vector<2x8x8xf32>
    %330 = math.exp %329 : vector<2x8x8xf32>
    %cst_114 = arith.constant dense<0.000000e+00> : vector<2x8xf32>
    %331 = vector.multi_reduction <add>, %330, %cst_114 [2] : vector<2x8x8xf32> to vector<2x8xf32>
    %332 = vector.shape_cast %331 : vector<2x8xf32> to vector<2x8x1xf32>
    %333 = tpu.reciprocal %332 {approx = true} : vector<2x8x1xf32> -> vector<2x8x1xf32>
    %334 = vector.broadcast %333 : vector<2x8x1xf32> to vector<2x8x8xf32>
    %335 = arith.mulf %330, %334 : vector<2x8x8xf32>
    %336 = arith.truncf %335 : vector<2x8x8xf32> to vector<2x8x8xbf16>
    "tpu.trace_start"() <{level = 10 : i32, message = "bqk,bkd->bqd"}> : () -> ()
    %cst_115 = arith.constant dense<0.000000e+00> : vector<2x8x8xf32>
    %337 = tpu.matmul %336, %322, %cst_115 {dimension_numbers = #tpu.dot_dimension_numbers<[2], [1], [1], [2], [0, 0, 0, 1, 1, 2], [0], [0]>} : vector<2x8x8xbf16>, vector<2x8x8xbf16>, vector<2x8x8xf32> -> vector<2x8x8xf32>
    "tpu.trace_stop"() : () -> ()
    %338 = vector.shape_cast %337 : vector<2x8x8xf32> to vector<16x8xf32>
    %339 = arith.truncf %338 : vector<16x8xf32> to vector<16x8xbf16>
    %340 = vector.extract_strided_slice %221 {offsets = [24, 0], sizes = [8, 32], strides = [1, 1]} : vector<32x32xbf16> to vector<8x32xbf16>
    %cst_116 = arith.constant dense<0.000000e+00> : vector<16x32xf32>
    %341 = tpu.matmul %339, %340, %cst_116 {dimension_numbers = #tpu.dot_dimension_numbers<[1], [0], [0], [1], [0, 0, 1, 1], [], []>} : vector<16x8xbf16>, vector<8x32xbf16>, vector<16x32xf32> -> vector<16x32xf32>
    %342 = arith.addf %313, %341 : vector<16x32xf32>
    %343 = arith.addf %211, %342 : vector<16x32xf32>
    %c1_117 = arith.constant 1 : index
    %c0_118 = arith.constant 0 : index
    %c0_119 = arith.constant 0 : index
    %344 = vector.load %arg8[%c1_117, %c0_118, %c0_119] : memref<2x1x32xf32, #tpu.memory_space<vmem>>, vector<1x1x32xf32>
    %345 = vector.shape_cast %344 : vector<1x1x32xf32> to vector<1x32xf32>
    %c1_120 = arith.constant 1 : index
    %c0_121 = arith.constant 0 : index
    %c0_122 = arith.constant 0 : index
    %346 = vector.load %arg9[%c1_120, %c0_121, %c0_122] : memref<2x1x32xf32, #tpu.memory_space<vmem>>, vector<1x1x32xf32>
    %347 = vector.shape_cast %346 : vector<1x1x32xf32> to vector<1x32xf32>
    %cst_123 = arith.constant dense<0.000000e+00> : vector<16xf32>
    %348 = vector.multi_reduction <add>, %343, %cst_123 [1] : vector<16x32xf32> to vector<16xf32>
    %349 = vector.shape_cast %348 : vector<16xf32> to vector<16x1xf32>
    %cst_124 = arith.constant 3.200000e+01 : f32
    %350 = vector.broadcast %cst_124 : f32 to vector<16x1xf32>
    %351 = arith.divf %349, %350 : vector<16x1xf32>
    %352 = vector.broadcast %351 : vector<16x1xf32> to vector<16x32xf32>
    %353 = arith.subf %343, %352 : vector<16x32xf32>
    %354 = arith.mulf %353, %353 : vector<16x32xf32>
    %cst_125 = arith.constant dense<0.000000e+00> : vector<16xf32>
    %355 = vector.multi_reduction <add>, %354, %cst_125 [1] : vector<16x32xf32> to vector<16xf32>
    %356 = vector.shape_cast %355 : vector<16xf32> to vector<16x1xf32>
    %cst_126 = arith.constant 3.200000e+01 : f32
    %357 = vector.broadcast %cst_126 : f32 to vector<16x1xf32>
    %358 = arith.divf %356, %357 : vector<16x1xf32>
    %359 = vector.broadcast %351 : vector<16x1xf32> to vector<16x32xf32>
    %360 = arith.subf %343, %359 : vector<16x32xf32>
    %cst_127 = arith.constant 9.99999974E-6 : f32
    %361 = vector.broadcast %cst_127 : f32 to vector<16x1xf32>
    %362 = arith.addf %358, %361 : vector<16x1xf32>
    %363 = math.rsqrt %362 : vector<16x1xf32>
    %364 = vector.broadcast %363 : vector<16x1xf32> to vector<16x32xf32>
    %365 = arith.mulf %360, %364 : vector<16x32xf32>
    %366 = vector.broadcast %345 : vector<1x32xf32> to vector<16x32xf32>
    %367 = arith.mulf %365, %366 : vector<16x32xf32>
    %368 = vector.broadcast %347 : vector<1x32xf32> to vector<16x32xf32>
    %369 = arith.addf %367, %368 : vector<16x32xf32>
    %370 = arith.truncf %369 : vector<16x32xf32> to vector<16x32xbf16>
    %c1_128 = arith.constant 1 : index
    %c0_129 = arith.constant 0 : index
    %c0_130 = arith.constant 0 : index
    %371 = vector.load %arg10[%c1_128, %c0_129, %c0_130] : memref<2x32x64xbf16, #tpu.memory_space<vmem>>, vector<1x32x64xbf16>
    %372 = vector.shape_cast %371 : vector<1x32x64xbf16> to vector<32x64xbf16>
    %cst_131 = arith.constant dense<0.000000e+00> : vector<16x64xf32>
    %373 = tpu.matmul %370, %372, %cst_131 {dimension_numbers = #tpu.dot_dimension_numbers<[1], [0], [0], [1], [0, 0, 1, 1], [], []>} : vector<16x32xbf16>, vector<32x64xbf16>, vector<16x64xf32> -> vector<16x64xf32>
    %c1_132 = arith.constant 1 : index
    %c0_133 = arith.constant 0 : index
    %c0_134 = arith.constant 0 : index
    %374 = vector.load %arg11[%c1_132, %c0_133, %c0_134] : memref<2x1x64xf32, #tpu.memory_space<vmem>>, vector<1x1x64xf32>
    %375 = vector.shape_cast %374 : vector<1x1x64xf32> to vector<1x64xf32>
    %376 = vector.broadcast %375 : vector<1x64xf32> to vector<16x64xf32>
    %377 = arith.addf %373, %376 : vector<16x64xf32>
    %cst_135 = arith.constant 0.000000e+00 : f32
    %378 = vector.broadcast %cst_135 : f32 to vector<16x64xf32>
    %379 = arith.maximumf %377, %378 : vector<16x64xf32>
    %380 = arith.truncf %379 : vector<16x64xf32> to vector<16x64xbf16>
    %c1_136 = arith.constant 1 : index
    %c0_137 = arith.constant 0 : index
    %c0_138 = arith.constant 0 : index
    %381 = vector.load %arg12[%c1_136, %c0_137, %c0_138] : memref<2x64x32xbf16, #tpu.memory_space<vmem>>, vector<1x64x32xbf16>
    %382 = vector.shape_cast %381 : vector<1x64x32xbf16> to vector<64x32xbf16>
    %cst_139 = arith.constant dense<0.000000e+00> : vector<16x32xf32>
    %383 = tpu.matmul %380, %382, %cst_139 {dimension_numbers = #tpu.dot_dimension_numbers<[1], [0], [0], [1], [0, 0, 1, 1], [], []>} : vector<16x64xbf16>, vector<64x32xbf16>, vector<16x32xf32> -> vector<16x32xf32>
    %c1_140 = arith.constant 1 : index
    %c0_141 = arith.constant 0 : index
    %c0_142 = arith.constant 0 : index
    %384 = vector.load %arg13[%c1_140, %c0_141, %c0_142] : memref<2x1x32xf32, #tpu.memory_space<vmem>>, vector<1x1x32xf32>
    %385 = vector.shape_cast %384 : vector<1x1x32xf32> to vector<1x32xf32>
    %386 = vector.broadcast %385 : vector<1x32xf32> to vector<16x32xf32>
    %387 = arith.addf %383, %386 : vector<16x32xf32>
    %388 = arith.addf %369, %387 : vector<16x32xf32>
    %c1_143 = arith.constant 1 : index
    %c0_144 = arith.constant 0 : index
    %c0_145 = arith.constant 0 : index
    %389 = vector.load %arg14[%c1_143, %c0_144, %c0_145] : memref<2x1x32xf32, #tpu.memory_space<vmem>>, vector<1x1x32xf32>
    %390 = vector.shape_cast %389 : vector<1x1x32xf32> to vector<1x32xf32>
    %c1_146 = arith.constant 1 : index
    %c0_147 = arith.constant 0 : index
    %c0_148 = arith.constant 0 : index
    %391 = vector.load %arg15[%c1_146, %c0_147, %c0_148] : memref<2x1x32xf32, #tpu.memory_space<vmem>>, vector<1x1x32xf32>
    %392 = vector.shape_cast %391 : vector<1x1x32xf32> to vector<1x32xf32>
    %cst_149 = arith.constant dense<0.000000e+00> : vector<16xf32>
    %393 = vector.multi_reduction <add>, %388, %cst_149 [1] : vector<16x32xf32> to vector<16xf32>
    %394 = vector.shape_cast %393 : vector<16xf32> to vector<16x1xf32>
    %cst_150 = arith.constant 3.200000e+01 : f32
    %395 = vector.broadcast %cst_150 : f32 to vector<16x1xf32>
    %396 = arith.divf %394, %395 : vector<16x1xf32>
    %397 = vector.broadcast %396 : vector<16x1xf32> to vector<16x32xf32>
    %398 = arith.subf %388, %397 : vector<16x32xf32>
    %399 = arith.mulf %398, %398 : vector<16x32xf32>
    %cst_151 = arith.constant dense<0.000000e+00> : vector<16xf32>
    %400 = vector.multi_reduction <add>, %399, %cst_151 [1] : vector<16x32xf32> to vector<16xf32>
    %401 = vector.shape_cast %400 : vector<16xf32> to vector<16x1xf32>
    %cst_152 = arith.constant 3.200000e+01 : f32
    %402 = vector.broadcast %cst_152 : f32 to vector<16x1xf32>
    %403 = arith.divf %401, %402 : vector<16x1xf32>
    %404 = vector.broadcast %396 : vector<16x1xf32> to vector<16x32xf32>
    %405 = arith.subf %388, %404 : vector<16x32xf32>
    %cst_153 = arith.constant 9.99999974E-6 : f32
    %406 = vector.broadcast %cst_153 : f32 to vector<16x1xf32>
    %407 = arith.addf %403, %406 : vector<16x1xf32>
    %408 = math.rsqrt %407 : vector<16x1xf32>
    %409 = vector.broadcast %408 : vector<16x1xf32> to vector<16x32xf32>
    %410 = arith.mulf %405, %409 : vector<16x32xf32>
    %411 = vector.broadcast %390 : vector<1x32xf32> to vector<16x32xf32>
    %412 = arith.mulf %410, %411 : vector<16x32xf32>
    %413 = vector.broadcast %392 : vector<1x32xf32> to vector<16x32xf32>
    %414 = arith.addf %412, %413 : vector<16x32xf32>
    %415 = vector.shape_cast %414 : vector<16x32xf32> to vector<2x8x32xf32>
    %416 = vector.extract_strided_slice %415 {offsets = [0, 7, 0], sizes = [2, 1, 32], strides = [1, 1, 1]} : vector<2x8x32xf32> to vector<2x1x32xf32>
    %417 = vector.shape_cast %416 : vector<2x1x32xf32> to vector<2x32xf32>
    %418 = arith.truncf %417 : vector<2x32xf32> to vector<2x32xbf16>
    %c0_154 = arith.constant 0 : index
    %c0_155 = arith.constant 0 : index
    %419 = vector.load %arg16[%c0_154, %c0_155] : memref<32x1xbf16, #tpu.memory_space<vmem>>, vector<32x1xbf16>
    %cst_156 = arith.constant dense<0.000000e+00> : vector<2x1xf32>
    %420 = tpu.matmul %418, %419, %cst_156 {dimension_numbers = #tpu.dot_dimension_numbers<[1], [0], [0], [1], [0, 0, 1, 1], [], []>} : vector<2x32xbf16>, vector<32x1xbf16>, vector<2x1xf32> -> vector<2x1xf32>
    %c0_157 = arith.constant 0 : index
    %c0_158 = arith.constant 0 : index
    %421 = vector.load %arg17[%c0_157, %c0_158] : memref<1x1xf32, #tpu.memory_space<vmem>>, vector<1x1xf32>
    %422 = vector.broadcast %421 : vector<1x1xf32> to vector<2x1xf32>
    %423 = arith.addf %420, %422 : vector<2x1xf32>
    %c0_159 = arith.constant 0 : index
    %c0_160 = arith.constant 0 : index
    %c0_161 = arith.constant 0 : index
    %424 = vector.load %arg18[%c0_159, %c0_160, %c0_161] : memref<2x1x1xf32, #tpu.memory_space<vmem>>, vector<2x1x1xf32>
    %425 = vector.shape_cast %424 : vector<2x1x1xf32> to vector<2x1xf32>
    %426 = vector.shape_cast %423 : vector<2x1xf32> to vector<2x1x1xf32>
    tpu.vector_store %arg18[%c0_159, %c0_160, %c0_161], %426 {strides = array<i32>} : memref<2x1x1xf32, #tpu.memory_space<vmem>>, vector<2x1x1xf32>,
    return
  }
  func.func @transform_0(%arg0: i32) -> (i32, i32, i32) {
    %c0_i32 = arith.constant 0 : i32
    %c0_i32_0 = arith.constant 0 : i32
    %c0_i32_1 = arith.constant 0 : i32
    return %arg0, %c0_i32, %c0_i32_0 : i32, i32, i32
  }
  func.func @transform_1(%arg0: i32) -> (i32, i32) {
    %c0_i32 = arith.constant 0 : i32
    %c0_i32_0 = arith.constant 0 : i32
    %c0_i32_1 = arith.constant 0 : i32
    return %c0_i32, %c0_i32_0 : i32, i32
  }
  func.func @transform_2(%arg0: i32) -> (i32, i32) {
    %c0_i32 = arith.constant 0 : i32
    %c0_i32_0 = arith.constant 0 : i32
    %c0_i32_1 = arith.constant 0 : i32
    return %c0_i32, %c0_i32_0 : i32, i32
  }
  func.func @transform_3(%arg0: i32) -> (i32, i32, i32) {
    %c0_i32 = arith.constant 0 : i32
    %c0_i32_0 = arith.constant 0 : i32
    %c0_i32_1 = arith.constant 0 : i32
    %c0_i32_2 = arith.constant 0 : i32
    return %c0_i32, %c0_i32_0, %c0_i32_1 : i32, i32, i32
  }
  func.func @transform_4(%arg0: i32) -> (i32, i32, i32) {
    %c0_i32 = arith.constant 0 : i32
    %c0_i32_0 = arith.constant 0 : i32
    %c0_i32_1 = arith.constant 0 : i32
    %c0_i32_2 = arith.constant 0 : i32
    return %c0_i32, %c0_i32_0, %c0_i32_1 : i32, i32, i32
  }
  func.func @transform_5(%arg0: i32) -> (i32, i32, i32) {
    %c0_i32 = arith.constant 0 : i32
    %c0_i32_0 = arith.constant 0 : i32
    %c0_i32_1 = arith.constant 0 : i32
    %c0_i32_2 = arith.constant 0 : i32
    return %c0_i32, %c0_i32_0, %c0_i32_1 : i32, i32, i32
  }
  func.func @transform_6(%arg0: i32) -> (i32, i32, i32) {
    %c0_i32 = arith.constant 0 : i32
    %c0_i32_0 = arith.constant 0 : i32
    %c0_i32_1 = arith.constant 0 : i32
    %c0_i32_2 = arith.constant 0 : i32
    return %c0_i32, %c0_i32_0, %c0_i32_1 : i32, i32, i32
  }
  func.func @transform_7(%arg0: i32) -> (i32, i32, i32) {
    %c0_i32 = arith.constant 0 : i32
    %c0_i32_0 = arith.constant 0 : i32
    %c0_i32_1 = arith.constant 0 : i32
    %c0_i32_2 = arith.constant 0 : i32
    return %c0_i32, %c0_i32_0, %c0_i32_1 : i32, i32, i32
  }
  func.func @transform_8(%arg0: i32) -> (i32, i32, i32) {
    %c0_i32 = arith.constant 0 : i32
    %c0_i32_0 = arith.constant 0 : i32
    %c0_i32_1 = arith.constant 0 : i32
    %c0_i32_2 = arith.constant 0 : i32
    return %c0_i32, %c0_i32_0, %c0_i32_1 : i32, i32, i32
  }
  func.func @transform_9(%arg0: i32) -> (i32, i32, i32) {
    %c0_i32 = arith.constant 0 : i32
    %c0_i32_0 = arith.constant 0 : i32
    %c0_i32_1 = arith.constant 0 : i32
    %c0_i32_2 = arith.constant 0 : i32
    return %c0_i32, %c0_i32_0, %c0_i32_1 : i32, i32, i32
  }
  func.func @transform_10(%arg0: i32) -> (i32, i32, i32) {
    %c0_i32 = arith.constant 0 : i32
    %c0_i32_0 = arith.constant 0 : i32
    %c0_i32_1 = arith.constant 0 : i32
    %c0_i32_2 = arith.constant 0 : i32
    return %c0_i32, %c0_i32_0, %c0_i32_1 : i32, i32, i32
  }
  func.func @transform_11(%arg0: i32) -> (i32, i32, i32) {
    %c0_i32 = arith.constant 0 : i32
    %c0_i32_0 = arith.constant 0 : i32
    %c0_i32_1 = arith.constant 0 : i32
    %c0_i32_2 = arith.constant 0 : i32
    return %c0_i32, %c0_i32_0, %c0_i32_1 : i32, i32, i32
  }
  func.func @transform_12(%arg0: i32) -> (i32, i32, i32) {
    %c0_i32 = arith.constant 0 : i32
    %c0_i32_0 = arith.constant 0 : i32
    %c0_i32_1 = arith.constant 0 : i32
    %c0_i32_2 = arith.constant 0 : i32
    return %c0_i32, %c0_i32_0, %c0_i32_1 : i32, i32, i32
  }
  func.func @transform_13(%arg0: i32) -> (i32, i32, i32) {
    %c0_i32 = arith.constant 0 : i32
    %c0_i32_0 = arith.constant 0 : i32
    %c0_i32_1 = arith.constant 0 : i32
    %c0_i32_2 = arith.constant 0 : i32
    return %c0_i32, %c0_i32_0, %c0_i32_1 : i32, i32, i32
  }
  func.func @transform_14(%arg0: i32) -> (i32, i32, i32) {
    %c0_i32 = arith.constant 0 : i32
    %c0_i32_0 = arith.constant 0 : i32
    %c0_i32_1 = arith.constant 0 : i32
    %c0_i32_2 = arith.constant 0 : i32
    return %c0_i32, %c0_i32_0, %c0_i32_1 : i32, i32, i32
  }
  func.func @transform_15(%arg0: i32) -> (i32, i32) {
    %c0_i32 = arith.constant 0 : i32
    %c0_i32_0 = arith.constant 0 : i32
    %c0_i32_1 = arith.constant 0 : i32
    return %c0_i32, %c0_i32_0 : i32, i32
  }
  func.func @transform_16(%arg0: i32) -> (i32, i32) {
    %c0_i32 = arith.constant 0 : i32
    %c0_i32_0 = arith.constant 0 : i32
    %c0_i32_1 = arith.constant 0 : i32
    return %c0_i32, %c0_i32_0 : i32, i32
  }
  func.func @transform_17(%arg0: i32) -> (i32, i32, i32) {
    %c0_i32 = arith.constant 0 : i32
    %c0_i32_0 = arith.constant 0 : i32
    %c0_i32_1 = arith.constant 0 : i32
    return %arg0, %c0_i32, %c0_i32_0 : i32, i32, i32
  }
}

</mosaic_0001>

<llo_original>
// kernel: transformer_forward.1
$region0: #{transformer_forward.1}
  #allocation0 [shape = 'u32[]', space=smem, size = 0x4, offset = 0x4, fixed_abs, tag = 'smem constant byte address 0x4 - core index']
  #allocation1 [shape = 'u32[72,128]{1,0:T(1,128)}', space=vmem, size = 0x9000, scoped, tag = 'internal scratch']
  #allocation2 [shape = 'f32[1,1]{1,0:T(1,128)S(1)}', space=vmem, size = 0x200, scoped, tag = 'scoped memory for transformer_forward.1']
  %s0 = inlined_call_operand.vmem [shape: f32[2,8,1], index: 0, kind: input, shape index: {}]
  %s1 = inlined_call_operand.hbm [shape: f32[1,32], index: 1, kind: input, shape index: {}]
  %s2 = inlined_call_operand.hbm [shape: f32[1,32], index: 2, kind: input, shape index: {}]
  %s3 = inlined_call_operand.vmem [shape: bf16[2,32,96], index: 3, kind: input, shape index: {}]
  %s4 = inlined_call_operand.vmem [shape: f32[2,1,96], index: 4, kind: input, shape index: {}]
  %s5 = inlined_call_operand.vmem [shape: bf16[2,32,32], index: 5, kind: input, shape index: {}]
  %s6 = inlined_call_operand.vmem [shape: f32[2,1,32], index: 6, kind: input, shape index: {}]
  %s7 = inlined_call_operand.vmem [shape: f32[2,1,32], index: 7, kind: input, shape index: {}]
  %s8 = inlined_call_operand.vmem [shape: f32[2,1,32], index: 8, kind: input, shape index: {}]
  %s9 = inlined_call_operand.vmem [shape: bf16[2,32,64], index: 9, kind: input, shape index: {}]
  %s10 = inlined_call_operand.vmem [shape: f32[2,1,64], index: 10, kind: input, shape index: {}]
  %s11 = inlined_call_operand.vmem [shape: bf16[2,64,32], index: 11, kind: input, shape index: {}]
  %s12 = inlined_call_operand.vmem [shape: f32[2,1,32], index: 12, kind: input, shape index: {}]
  %s13 = inlined_call_operand.vmem [shape: f32[2,1,32], index: 13, kind: input, shape index: {}]
  %s14 = inlined_call_operand.vmem [shape: f32[2,1,32], index: 14, kind: input, shape index: {}]
  %s15 = inlined_call_operand.vmem [shape: bf16[32,1], index: 15, kind: input, shape index: {}]
  %s16 = inlined_call_operand.<no memory space> [shape: f32[1,1], index: 16, kind: input, shape index: {}]
  %s17 = inlined_call_operand.vmem [shape: f32[2,1,1], index: 17, kind: output, shape index: {}]
  %s18 = sld [smem:[#allocation0]]
  $region86: #{transformer_forward.1} parent=0
    _
  %s20 = ssub.s32 1, %s18
  %s21 = scalar_select 0, %s20, %s18
  %v22 = vstv %s16
  %23 = vst [vmem:[#allocation2] sm:$0x1] %v22
  $region1: #{transformer_forward.1} parent=0
    #allocation3 [shape = 'u8[512]{0}', space=vmem, size = 0x400, scoped, tag = 'input window, operand 1, single buffered']
    #allocation4 [shape = 's32[1]{0}', space=sflag, size = 0x4, scoped, tag = 'scoped memory for transformer_forward.1']
    #allocation5 [shape = 'u8[512]{0}', space=vmem, size = 0x400, scoped, tag = 'input window, operand 2, single buffered']
    #allocation6 [shape = 's32[1]{0}', space=sflag, size = 0x4, scoped, tag = 'scoped memory for transformer_forward.1']
    %24 = vsyncpa [#allocation4], 0
    %25 = vsyncpa [#allocation6], 0
    // Predicated region
    $region2: #{transformer_forward.1} parent=1 // pred_check
      _
    $region3: #{transformer_forward.1} parent=1 // pred_check_branch
      %27 = sbr.rel (0) target = $region5
    $region4: #{transformer_forward.1} parent=1 // pred_region
      _
    $region5: #{transformer_forward.1} parent=1 // pred_fallthru
      _
    // Predicated region
    $region6: #{transformer_forward.1} parent=1 // pred_check
      _
    $region7: #{transformer_forward.1} parent=1 // pred_check_branch
      %29 = sbr.rel (0) target = $region9
    $region8: #{transformer_forward.1} parent=1 // pred_region
      %31 = vsyncadd [#allocation4], 0
      %s33 = sshll.u32 %s1, 4
      %s34 = int_to_ptr.hbm [resolvable:$true] %s33
      %s35 = sshll.u32 [#allocation3], 4
      %s36 = int_to_ptr.vmem [resolvable:$true] %s35
      %38 = dma.hbm_to_vmem [thread:$0]  %s34, 16, %s36, [#allocation4]
    $region9: #{transformer_forward.1} parent=1 // pred_fallthru
      _
    // Predicated region
    $region10: #{transformer_forward.1} parent=1 // pred_check
      _
    $region11: #{transformer_forward.1} parent=1 // pred_check_branch
      %40 = sbr.rel (0) target = $region13
    $region12: #{transformer_forward.1} parent=1 // pred_region
      %42 = vsyncadd [#allocation6], 0
      %s44 = sshll.u32 %s2, 4
      %s45 = int_to_ptr.hbm [resolvable:$true] %s44
      %s46 = sshll.u32 [#allocation5], 4
      %s47 = int_to_ptr.vmem [resolvable:$true] %s46
      %49 = dma.hbm_to_vmem [thread:$0]  %s45, 16, %s47, [#allocation6]
    $region13: #{transformer_forward.1} parent=1 // pred_fallthru
      _
    // Predicated region
    $region14: #{transformer_forward.1} parent=1 // pred_check
      _
    $region15: #{transformer_forward.1} parent=1 // pred_check_branch
      %51 = sbr.rel (0) target = $region17
    $region16: #{transformer_forward.1} parent=1 // pred_region
      _
    $region17: #{transformer_forward.1} parent=1 // pred_fallthru
      _
    // Predicated region
    $region18: #{transformer_forward.1} parent=1 // pred_check
      _
    $region19: #{transformer_forward.1} parent=1 // pred_check_branch
      %53 = sbr.rel (0) target = $region21
    $region20: #{transformer_forward.1} parent=1 // pred_region
      _
    $region21: #{transformer_forward.1} parent=1 // pred_fallthru
      _
    // Predicated region
    $region22: #{transformer_forward.1} parent=1 // pred_check
      _
    $region23: #{transformer_forward.1} parent=1 // pred_check_branch
      %55 = sbr.rel (0) target = $region25
    $region24: #{transformer_forward.1} parent=1 // pred_region
      _
    $region25: #{transformer_forward.1} parent=1 // pred_fallthru
      _
    // Predicated region
    $region26: #{transformer_forward.1} parent=1 // pred_check
      _
    $region27: #{transformer_forward.1} parent=1 // pred_check_branch
      %57 = sbr.rel (0) target = $region29
    $region28: #{transformer_forward.1} parent=1 // pred_region
      _
    $region29: #{transformer_forward.1} parent=1 // pred_fallthru
      _
    // Predicated region
    $region30: #{transformer_forward.1} parent=1 // pred_check
      _
    $region31: #{transformer_forward.1} parent=1 // pred_check_branch
      %59 = sbr.rel (0) target = $region33
    $region32: #{transformer_forward.1} parent=1 // pred_region
      _
    $region33: #{transformer_forward.1} parent=1 // pred_fallthru
      _
    // Predicated region
    $region34: #{transformer_forward.1} parent=1 // pred_check
      _
    $region35: #{transformer_forward.1} parent=1 // pred_check_branch
      %61 = sbr.rel (0) target = $region37
    $region36: #{transformer_forward.1} parent=1 // pred_region
      _
    $region37: #{transformer_forward.1} parent=1 // pred_fallthru
      _
    // Predicated region
    $region38: #{transformer_forward.1} parent=1 // pred_check
      _
    $region39: #{transformer_forward.1} parent=1 // pred_check_branch
      %63 = sbr.rel (0) target = $region41
    $region40: #{transformer_forward.1} parent=1 // pred_region
      _
    $region41: #{transformer_forward.1} parent=1 // pred_fallthru
      _
    // Predicated region
    $region42: #{transformer_forward.1} parent=1 // pred_check
      _
    $region43: #{transformer_forward.1} parent=1 // pred_check_branch
      %65 = sbr.rel (0) target = $region45
    $region44: #{transformer_forward.1} parent=1 // pred_region
      _
    $region45: #{transformer_forward.1} parent=1 // pred_fallthru
      _
    // Predicated region
    $region46: #{transformer_forward.1} parent=1 // pred_check
      _
    $region47: #{transformer_forward.1} parent=1 // pred_check_branch
      %67 = sbr.rel (0) target = $region49
    $region48: #{transformer_forward.1} parent=1 // pred_region
      _
    $region49: #{transformer_forward.1} parent=1 // pred_fallthru
      _
    // Predicated region
    $region50: #{transformer_forward.1} parent=1 // pred_check
      _
    $region51: #{transformer_forward.1} parent=1 // pred_check_branch
      %69 = sbr.rel (0) target = $region53
    $region52: #{transformer_forward.1} parent=1 // pred_region
      _
    $region53: #{transformer_forward.1} parent=1 // pred_fallthru
      _
    // Predicated region
    $region54: #{transformer_forward.1} parent=1 // pred_check
      _
    $region55: #{transformer_forward.1} parent=1 // pred_check_branch
      %71 = sbr.rel (0) target = $region57
    $region56: #{transformer_forward.1} parent=1 // pred_region
      _
    $region57: #{transformer_forward.1} parent=1 // pred_fallthru
      _
    // Predicated region
    $region58: #{transformer_forward.1} parent=1 // pred_check
      _
    $region59: #{transformer_forward.1} parent=1 // pred_check_branch
      %73 = sbr.rel (0) target = $region61
    $region60: #{transformer_forward.1} parent=1 // pred_region
      _
    $region61: #{transformer_forward.1} parent=1 // pred_fallthru
      _
    // Predicated region
    $region62: #{transformer_forward.1} parent=1 // pred_check
      _
    $region63: #{transformer_forward.1} parent=1 // pred_check_branch
      %75 = sbr.rel (0) target = $region65
    $region64: #{transformer_forward.1} parent=1 // pred_region
      _
    $region65: #{transformer_forward.1} parent=1 // pred_fallthru
      _
    // Predicated region
    $region66: #{transformer_forward.1} parent=1 // pred_check
      _
    $region67: #{transformer_forward.1} parent=1 // pred_check_branch
      %77 = sbr.rel (0) target = $region69
    $region68: #{transformer_forward.1} parent=1 // pred_region
      _
    $region69: #{transformer_forward.1} parent=1 // pred_fallthru
      _
    // Predicated region
    $region70: #{transformer_forward.1} parent=1 // pred_check
      _
    $region71: #{transformer_forward.1} parent=1 // pred_check_branch
      %79 = sbr.rel (0) target = $region73
    $region72: #{transformer_forward.1} parent=1 // pred_region
      %81 = dma.done [#allocation4], 16
    $region73: #{transformer_forward.1} parent=1 // pred_fallthru
      _
    // Predicated region
    $region74: #{transformer_forward.1} parent=1 // pred_check
      _
    $region75: #{transformer_forward.1} parent=1 // pred_check_branch
      %83 = sbr.rel (0) target = $region77
    $region76: #{transformer_forward.1} parent=1 // pred_region
      %85 = dma.done [#allocation6], 16
    $region77: #{transformer_forward.1} parent=1 // pred_fallthru
      _
    %v87 = vld [vmem:[%s0] sm:$0xff]
    %v88 = vld [vmem:[%s0 + $0x8] sm:$0xff]
    %v89 = vld [vmem:[#allocation3] sm:$0x1]
    %91 = vset.pattern.permute.xlu0 0
    %92 = vperm.xlu0 %91, %v87
    %v93 = vpop.permute.xlu0 %92
    %96 = vset.pattern.permute.xlu0 0
    %97 = vperm.xlu0 %96, %v88
    %v98 = vpop.permute.xlu0 %97
    %v101 = vperm.slane %v89, 0
    %v103 = vmul.f32 %v93, %v101
    %v104 = vmul.f32 %v98, %v101
    %v105 = vld [vmem:[#allocation5] sm:$0x1]
    %v107 = vperm.slane %v105, 0
    %v109 = vadd.f32 %v103, %v107
    %v110 = vadd.f32 %v104, %v107
    %v111 = vpack.c.bf16 %v110, %v109
    %v112 = vld [vmem:[%s3] sm:$0xf]
    %v113 = vld [vmem:[%s3 + $0x4] sm:$0xf]
    %v114 = vld [vmem:[%s3 + $0x8] sm:$0xf]
    %v115 = vld [vmem:[%s3 + $0xc] sm:$0xf]
    %v116 = vld [vmem:[%s4] sm:$0x1]
    %v118 = vperm.slane %v116, 0
    %v124 = vunpack.c.l.b16 %v112
    %v125 = vunpack.c.l.b16 %v113
    %v126 = vunpack.c.l.b16 %v114
    %v127 = vunpack.c.l.b16 %v115
    %v128 = vpack.c.b16 %v125, %v124
    %v129 = vpack.c.b16 %v127, %v126
    %vm132 = vcmask 261120
    %v134 = vsel %vm132, %v111, 0
    %136 = vmatpush.bf16.msra.mxu0 0
    %137 = vmatpush.bf16.msra.mxu0 0
    %138 = vmatpush.bf16.msra.mxu0 0
    %139 = vmatpush.bf16.msra.mxu0 0
    %140 = vmatpush.bf16.msra.mxu0 0
    %141 = vmatpush.bf16.msra.mxu0 0
    %142 = vmatpush.bf16.msra.mxu0 %v129
    %143 = vmatpush.bf16.msra.mxu0 %v128
    %144 = vmatmul.bf16.gmra.mxu0 %v134
    %v145 = vpop.f32.mrf.mxu0
    %v146 = vadd.f32 %v118, %v145
    %v147 = vpop.f32.mrf.mxu0
    %v148 = vadd.f32 %v118, %v147
    %149 = vdwg.mxu0
    %v150 = vld [vmem:[%s5] sm:$0xf]
    %v151 = vld [vmem:[%s5 + $0x4] sm:$0xf]
    %v152 = vld [vmem:[%s5 + $0x8] sm:$0xf]
    %v153 = vld [vmem:[%s5 + $0xc] sm:$0xf]
    %v154 = vld [vmem:[%s6] sm:$0x1]
    %v156 = vperm.slane %v154, 0
    %v158 = vadd.f32 %v156, 0.0
    %v159 = vpack.c.bf16 %v146, %v146
    %v160 = vpack.c.bf16 %v148, %v148
    %v162 = vunpack.c.l.b16 %v159
    %v163 = vpack.c.b16 %v162, %v162
    %164 = vrot.lane.b32.xlu0 %v163, 96
    %v165 = vpop.permute.xlu0 %164
    %vm166 = vcmask 64512
    %v168 = vsel %vm166, %v159, 0
    %v171 = vsel %vm166, %v165, 0
    %173 = vmatpush.bf16.xpose.msra.mxu0 0
    %174 = vmatpush.bf16.xpose.msra.mxu0 0
    %175 = vmatpush.bf16.xpose.msra.mxu0 0
    %176 = vmatpush.bf16.xpose.msra.mxu0 0
    %177 = vmatpush.bf16.xpose.msra.mxu0 0
    %178 = vmatpush.bf16.xpose.msra.mxu0 0
    %179 = vmatpush.bf16.xpose.msra.mxu0 0
    %180 = vmatpush.bf16.xpose.msra.mxu0 %v171
    %181 = vmatmul.bf16.gmra.mxu0 %v168
    %v182 = vpop.f32.mrf.mxu0
    %v183 = vadd.f32 0.0, %v182
    %v184 = vpop.f32.mrf.mxu0
    %185 = vdwg.mxu0
    %v187 = vunpack.c.l.b16 %v160
    %v188 = vpack.c.b16 %v187, %v187
    %189 = vrot.lane.b32.xlu0 %v188, 96
    %v190 = vpop.permute.xlu0 %189
    %v192 = vsel %vm166, %v160, 0
    %v195 = vsel %vm166, %v190, 0
    %197 = vmatpush.bf16.xpose.msra.mxu0 0
    %198 = vmatpush.bf16.xpose.msra.mxu0 0
    %199 = vmatpush.bf16.xpose.msra.mxu0 0
    %200 = vmatpush.bf16.xpose.msra.mxu0 0
    %201 = vmatpush.bf16.xpose.msra.mxu0 0
    %202 = vmatpush.bf16.xpose.msra.mxu0 0
    %203 = vmatpush.bf16.xpose.msra.mxu0 0
    %204 = vmatpush.bf16.xpose.msra.mxu0 %v195
    %205 = vmatmul.bf16.gmra.mxu0 %v192
    %v206 = vpop.f32.mrf.mxu0
    %v207 = vadd.f32 0.0, %v206
    %v208 = vpop.f32.mrf.mxu0
    %209 = vdwg.mxu0
    %v210 = vmul.f32 %v183, 0.35355338
    %v211 = vmul.f32 %v207, 0.35355338
    %v212 = vsel %vm166, %v210, -inf
    %213 = vmax.xlane.f32.xlu0 %v212
    %v214 = vpop.xlane.xlu0 %213
    %v215 = vsel %vm166, %v211, -inf
    %216 = vmax.xlane.f32.xlu0 %v215
    %v217 = vpop.xlane.xlu0 %216
    %v218 = vsub.f32 %v210, %v214
    %v219 = vsub.f32 %v211, %v217
    %v220 = vmul.f32 %v218, 1.442695
    %v221 = vpow.pop %v220
    %v222 = vmul.f32 %v219, 1.442695
    %v223 = vpow.pop %v222
    %v224 = vsel %vm166, %v221, 0.0
    %225 = vadd.xlane.f32.xlu0 %v224
    %v226 = vpop.xlane.xlu0 %225
    %v227 = vsel %vm166, %v223, 0.0
    %228 = vadd.xlane.f32.xlu0 %v227
    %v229 = vpop.xlane.xlu0 %228
    %v230 = vrcp.pop %v226
    %v231 = vrcp.pop %v229
    %v232 = vmul.f32 %v221, %v230
    %v233 = vmul.f32 %v223, %v231
    %v234 = vpack.c.bf16 %v232, %v232
    %v235 = vpack.c.bf16 %v233, %v233
    %236 = vrot.lane.b32.xlu0 %v163, 64
    %v237 = vpop.permute.xlu0 %236
    %v239 = vsel %vm166, %v234, 0
    %vm241 = vcmask 1043456
    %v243 = vsel %vm241, %v237, 0
    %245 = vmatpush.bf16.msra.mxu0 0
    %246 = vmatpush.bf16.msra.mxu0 0
    %247 = vmatpush.bf16.msra.mxu0 0
    %248 = vmatpush.bf16.msra.mxu0 0
    %249 = vmatpush.bf16.msra.mxu0 0
    %250 = vmatpush.bf16.msra.mxu0 0
    %251 = vmatpush.bf16.msra.mxu0 0
    %252 = vmatpush.bf16.msra.mxu0 %v243
    %253 = vmatmul.bf16.gmra.mxu0 %v239
    %v254 = vpop.f32.mrf.mxu0
    %v255 = vadd.f32 0.0, %v254
    %v256 = vpop.f32.mrf.mxu0
    %257 = vdwg.mxu0
    %258 = vrot.lane.b32.xlu0 %v188, 64
    %v259 = vpop.permute.xlu0 %258
    %v261 = vsel %vm166, %v235, 0
    %v264 = vsel %vm241, %v259, 0
    %266 = vmatpush.bf16.msra.mxu0 0
    %267 = vmatpush.bf16.msra.mxu0 0
    %268 = vmatpush.bf16.msra.mxu0 0
    %269 = vmatpush.bf16.msra.mxu0 0
    %270 = vmatpush.bf16.msra.mxu0 0
    %271 = vmatpush.bf16.msra.mxu0 0
    %272 = vmatpush.bf16.msra.mxu0 0
    %273 = vmatpush.bf16.msra.mxu0 %v264
    %274 = vmatmul.bf16.gmra.mxu0 %v261
    %v275 = vpop.f32.mrf.mxu0
    %v276 = vadd.f32 0.0, %v275
    %v277 = vpop.f32.mrf.mxu0
    %278 = vdwg.mxu0
    %v279 = vpack.c.bf16 %v276, %v255
    %v281 = vsel %vm166, %v279, 0
    %v284 = vsel %vm241, %v150, 0
    %286 = vmatpush.bf16.msra.mxu0 0
    %287 = vmatpush.bf16.msra.mxu0 0
    %288 = vmatpush.bf16.msra.mxu0 0
    %289 = vmatpush.bf16.msra.mxu0 0
    %290 = vmatpush.bf16.msra.mxu0 0
    %291 = vmatpush.bf16.msra.mxu0 0
    %292 = vmatpush.bf16.msra.mxu0 0
    %293 = vmatpush.bf16.msra.mxu0 %v284
    %294 = vmatmul.bf16.gmra.mxu0 %v281
    %v295 = vpop.f32.mrf.mxu0
    %v296 = vadd.f32 0.0, %v295
    %v297 = vpop.f32.mrf.mxu0
    %v298 = vadd.f32 0.0, %v297
    %299 = vdwg.mxu0
    %v300 = vadd.f32 %v158, %v296
    %v301 = vadd.f32 %v158, %v298
    %302 = vrot.lane.b32.xlu0 %v163, 120
    %v303 = vpop.permute.xlu0 %302
    %304 = vrot.lane.b32.xlu0 %v163, 88
    %v305 = vpop.permute.xlu0 %304
    %v307 = vsel %vm166, %v303, 0
    %v310 = vsel %vm166, %v305, 0
    %312 = vmatpush.bf16.xpose.msra.mxu0 0
    %313 = vmatpush.bf16.xpose.msra.mxu0 0
    %314 = vmatpush.bf16.xpose.msra.mxu0 0
    %315 = vmatpush.bf16.xpose.msra.mxu0 0
    %316 = vmatpush.bf16.xpose.msra.mxu0 0
    %317 = vmatpush.bf16.xpose.msra.mxu0 0
    %318 = vmatpush.bf16.xpose.msra.mxu0 0
    %319 = vmatpush.bf16.xpose.msra.mxu0 %v310
    %320 = vmatmul.bf16.gmra.mxu0 %v307
    %v321 = vpop.f32.mrf.mxu0
    %v322 = vadd.f32 0.0, %v321
    %v323 = vpop.f32.mrf.mxu0
    %324 = vdwg.mxu0
    %325 = vrot.lane.b32.xlu0 %v188, 120
    %v326 = vpop.permute.xlu0 %325
    %327 = vrot.lane.b32.xlu0 %v188, 88
    %v328 = vpop.permute.xlu0 %327
    %v330 = vsel %vm166, %v326, 0
    %v333 = vsel %vm166, %v328, 0
    %335 = vmatpush.bf16.xpose.msra.mxu0 0
    %336 = vmatpush.bf16.xpose.msra.mxu0 0
    %337 = vmatpush.bf16.xpose.msra.mxu0 0
    %338 = vmatpush.bf16.xpose.msra.mxu0 0
    %339 = vmatpush.bf16.xpose.msra.mxu0 0
    %340 = vmatpush.bf16.xpose.msra.mxu0 0
    %341 = vmatpush.bf16.xpose.msra.mxu0 0
    %342 = vmatpush.bf16.xpose.msra.mxu0 %v333
    %343 = vmatmul.bf16.gmra.mxu0 %v330
    %v344 = vpop.f32.mrf.mxu0
    %v345 = vadd.f32 0.0, %v344
    %v346 = vpop.f32.mrf.mxu0
    %347 = vdwg.mxu0
    %v348 = vmul.f32 %v322, 0.35355338
    %v349 = vmul.f32 %v345, 0.35355338
    %v350 = vsel %vm166, %v348, -inf
    %351 = vmax.xlane.f32.xlu0 %v350
    %v352 = vpop.xlane.xlu0 %351
    %v353 = vsel %vm166, %v349, -inf
    %354 = vmax.xlane.f32.xlu0 %v353
    %v355 = vpop.xlane.xlu0 %354
    %v356 = vsub.f32 %v348, %v352
    %v357 = vsub.f32 %v349, %v355
    %v358 = vmul.f32 %v356, 1.442695
    %v359 = vpow.pop %v358
    %v360 = vmul.f32 %v357, 1.442695
    %v361 = vpow.pop %v360
    %v362 = vsel %vm166, %v359, 0.0
    %363 = vadd.xlane.f32.xlu0 %v362
    %v364 = vpop.xlane.xlu0 %363
    %v365 = vsel %vm166, %v361, 0.0
    %366 = vadd.xlane.f32.xlu0 %v365
    %v367 = vpop.xlane.xlu0 %366
    %v368 = vrcp.pop %v364
    %v369 = vrcp.pop %v367
    %v370 = vmul.f32 %v359, %v368
    %v371 = vmul.f32 %v361, %v369
    %v372 = vpack.c.bf16 %v370, %v370
    %v373 = vpack.c.bf16 %v371, %v371
    %374 = vrot.lane.b32.xlu0 %v163, 56
    %v375 = vpop.permute.xlu0 %374
    %v377 = vsel %vm166, %v372, 0
    %v380 = vsel %vm241, %v375, 0
    %382 = vmatpush.bf16.msra.mxu0 0
    %383 = vmatpush.bf16.msra.mxu0 0
    %384 = vmatpush.bf16.msra.mxu0 0
    %385 = vmatpush.bf16.msra.mxu0 0
    %386 = vmatpush.bf16.msra.mxu0 0
    %387 = vmatpush.bf16.msra.mxu0 0
    %388 = vmatpush.bf16.msra.mxu0 0
    %389 = vmatpush.bf16.msra.mxu0 %v380
    %390 = vmatmul.bf16.gmra.mxu0 %v377
    %v391 = vpop.f32.mrf.mxu0
    %v392 = vadd.f32 0.0, %v391
    %v393 = vpop.f32.mrf.mxu0
    %394 = vdwg.mxu0
    %395 = vrot.lane.b32.xlu0 %v188, 56
    %v396 = vpop.permute.xlu0 %395
    %v398 = vsel %vm166, %v373, 0
    %v401 = vsel %vm241, %v396, 0
    %403 = vmatpush.bf16.msra.mxu0 0
    %404 = vmatpush.bf16.msra.mxu0 0
    %405 = vmatpush.bf16.msra.mxu0 0
    %406 = vmatpush.bf16.msra.mxu0 0
    %407 = vmatpush.bf16.msra.mxu0 0
    %408 = vmatpush.bf16.msra.mxu0 0
    %409 = vmatpush.bf16.msra.mxu0 0
    %410 = vmatpush.bf16.msra.mxu0 %v401
    %411 = vmatmul.bf16.gmra.mxu0 %v398
    %v412 = vpop.f32.mrf.mxu0
    %v413 = vadd.f32 0.0, %v412
    %v414 = vpop.f32.mrf.mxu0
    %415 = vdwg.mxu0
    %v416 = vpack.c.bf16 %v413, %v392
    %v418 = vsel %vm166, %v416, 0
    %v421 = vsel %vm241, %v151, 0
    %423 = vmatpush.bf16.msra.mxu0 0
    %424 = vmatpush.bf16.msra.mxu0 0
    %425 = vmatpush.bf16.msra.mxu0 0
    %426 = vmatpush.bf16.msra.mxu0 0
    %427 = vmatpush.bf16.msra.mxu0 0
    %428 = vmatpush.bf16.msra.mxu0 0
    %429 = vmatpush.bf16.msra.mxu0 0
    %430 = vmatpush.bf16.msra.mxu0 %v421
    %431 = vmatmul.bf16.gmra.mxu0 %v418
    %v432 = vpop.f32.mrf.mxu0
    %v433 = vadd.f32 0.0, %v432
    %v434 = vpop.f32.mrf.mxu0
    %v435 = vadd.f32 0.0, %v434
    %436 = vdwg.mxu0
    %v437 = vadd.f32 %v300, %v433
    %v438 = vadd.f32 %v301, %v435
    %439 = vrot.lane.b32.xlu0 %v163, 112
    %v440 = vpop.permute.xlu0 %439
    %441 = vrot.lane.b32.xlu0 %v163, 80
    %v442 = vpop.permute.xlu0 %441
    %v444 = vsel %vm166, %v440, 0
    %v447 = vsel %vm166, %v442, 0
    %449 = vmatpush.bf16.xpose.msra.mxu0 0
    %450 = vmatpush.bf16.xpose.msra.mxu0 0
    %451 = vmatpush.bf16.xpose.msra.mxu0 0
    %452 = vmatpush.bf16.xpose.msra.mxu0 0
    %453 = vmatpush.bf16.xpose.msra.mxu0 0
    %454 = vmatpush.bf16.xpose.msra.mxu0 0
    %455 = vmatpush.bf16.xpose.msra.mxu0 0
    %456 = vmatpush.bf16.xpose.msra.mxu0 %v447
    %457 = vmatmul.bf16.gmra.mxu0 %v444
    %v458 = vpop.f32.mrf.mxu0
    %v459 = vadd.f32 0.0, %v458
    %v460 = vpop.f32.mrf.mxu0
    %461 = vdwg.mxu0
    %462 = vrot.lane.b32.xlu0 %v188, 112
    %v463 = vpop.permute.xlu0 %462
    %464 = vrot.lane.b32.xlu0 %v188, 80
    %v465 = vpop.permute.xlu0 %464
    %v467 = vsel %vm166, %v463, 0
    %v470 = vsel %vm166, %v465, 0
    %472 = vmatpush.bf16.xpose.msra.mxu0 0
    %473 = vmatpush.bf16.xpose.msra.mxu0 0
    %474 = vmatpush.bf16.xpose.msra.mxu0 0
    %475 = vmatpush.bf16.xpose.msra.mxu0 0
    %476 = vmatpush.bf16.xpose.msra.mxu0 0
    %477 = vmatpush.bf16.xpose.msra.mxu0 0
    %478 = vmatpush.bf16.xpose.msra.mxu0 0
    %479 = vmatpush.bf16.xpose.msra.mxu0 %v470
    %480 = vmatmul.bf16.gmra.mxu0 %v467
    %v481 = vpop.f32.mrf.mxu0
    %v482 = vadd.f32 0.0, %v481
    %v483 = vpop.f32.mrf.mxu0
    %484 = vdwg.mxu0
    %v485 = vmul.f32 %v459, 0.35355338
    %v486 = vmul.f32 %v482, 0.35355338
    %v487 = vsel %vm166, %v485, -inf
    %488 = vmax.xlane.f32.xlu0 %v487
    %v489 = vpop.xlane.xlu0 %488
    %v490 = vsel %vm166, %v486, -inf
    %491 = vmax.xlane.f32.xlu0 %v490
    %v492 = vpop.xlane.xlu0 %491
    %v493 = vsub.f32 %v485, %v489
    %v494 = vsub.f32 %v486, %v492
    %v495 = vmul.f32 %v493, 1.442695
    %v496 = vpow.pop %v495
    %v497 = vmul.f32 %v494, 1.442695
    %v498 = vpow.pop %v497
    %v499 = vsel %vm166, %v496, 0.0
    %500 = vadd.xlane.f32.xlu0 %v499
    %v501 = vpop.xlane.xlu0 %500
    %v502 = vsel %vm166, %v498, 0.0
    %503 = vadd.xlane.f32.xlu0 %v502
    %v504 = vpop.xlane.xlu0 %503
    %v505 = vrcp.pop %v501
    %v506 = vrcp.pop %v504
    %v507 = vmul.f32 %v496, %v505
    %v508 = vmul.f32 %v498, %v506
    %v509 = vpack.c.bf16 %v507, %v507
    %v510 = vpack.c.bf16 %v508, %v508
    %511 = vrot.lane.b32.xlu0 %v163, 48
    %v512 = vpop.permute.xlu0 %511
    %v514 = vsel %vm166, %v509, 0
    %v517 = vsel %vm241, %v512, 0
    %519 = vmatpush.bf16.msra.mxu0 0
    %520 = vmatpush.bf16.msra.mxu0 0
    %521 = vmatpush.bf16.msra.mxu0 0
    %522 = vmatpush.bf16.msra.mxu0 0
    %523 = vmatpush.bf16.msra.mxu0 0
    %524 = vmatpush.bf16.msra.mxu0 0
    %525 = vmatpush.bf16.msra.mxu0 0
    %526 = vmatpush.bf16.msra.mxu0 %v517
    %527 = vmatmul.bf16.gmra.mxu0 %v514
    %v528 = vpop.f32.mrf.mxu0
    %v529 = vadd.f32 0.0, %v528
    %v530 = vpop.f32.mrf.mxu0
    %531 = vdwg.mxu0
    %532 = vrot.lane.b32.xlu0 %v188, 48
    %v533 = vpop.permute.xlu0 %532
    %v535 = vsel %vm166, %v510, 0
    %v538 = vsel %vm241, %v533, 0
    %540 = vmatpush.bf16.msra.mxu0 0
    %541 = vmatpush.bf16.msra.mxu0 0
    %542 = vmatpush.bf16.msra.mxu0 0
    %543 = vmatpush.bf16.msra.mxu0 0
    %544 = vmatpush.bf16.msra.mxu0 0
    %545 = vmatpush.bf16.msra.mxu0 0
    %546 = vmatpush.bf16.msra.mxu0 0
    %547 = vmatpush.bf16.msra.mxu0 %v538
    %548 = vmatmul.bf16.gmra.mxu0 %v535
    %v549 = vpop.f32.mrf.mxu0
    %v550 = vadd.f32 0.0, %v549
    %v551 = vpop.f32.mrf.mxu0
    %552 = vdwg.mxu0
    %v553 = vpack.c.bf16 %v550, %v529
    %v555 = vsel %vm166, %v553, 0
    %v558 = vsel %vm241, %v152, 0
    %560 = vmatpush.bf16.msra.mxu0 0
    %561 = vmatpush.bf16.msra.mxu0 0
    %562 = vmatpush.bf16.msra.mxu0 0
    %563 = vmatpush.bf16.msra.mxu0 0
    %564 = vmatpush.bf16.msra.mxu0 0
    %565 = vmatpush.bf16.msra.mxu0 0
    %566 = vmatpush.bf16.msra.mxu0 0
    %567 = vmatpush.bf16.msra.mxu0 %v558
    %568 = vmatmul.bf16.gmra.mxu0 %v555
    %v569 = vpop.f32.mrf.mxu0
    %v570 = vadd.f32 0.0, %v569
    %v571 = vpop.f32.mrf.mxu0
    %v572 = vadd.f32 0.0, %v571
    %573 = vdwg.mxu0
    %v574 = vadd.f32 %v437, %v570
    %v575 = vadd.f32 %v438, %v572
    %576 = vrot.lane.b32.xlu0 %v163, 104
    %v577 = vpop.permute.xlu0 %576
    %578 = vrot.lane.b32.xlu0 %v163, 72
    %v579 = vpop.permute.xlu0 %578
    %v581 = vsel %vm166, %v577, 0
    %v584 = vsel %vm166, %v579, 0
    %586 = vmatpush.bf16.xpose.msra.mxu0 0
    %587 = vmatpush.bf16.xpose.msra.mxu0 0
    %588 = vmatpush.bf16.xpose.msra.mxu0 0
    %589 = vmatpush.bf16.xpose.msra.mxu0 0
    %590 = vmatpush.bf16.xpose.msra.mxu0 0
    %591 = vmatpush.bf16.xpose.msra.mxu0 0
    %592 = vmatpush.bf16.xpose.msra.mxu0 0
    %593 = vmatpush.bf16.xpose.msra.mxu0 %v584
    %594 = vmatmul.bf16.gmra.mxu0 %v581
    %v595 = vpop.f32.mrf.mxu0
    %v596 = vadd.f32 0.0, %v595
    %v597 = vpop.f32.mrf.mxu0
    %598 = vdwg.mxu0
    %599 = vrot.lane.b32.xlu0 %v188, 104
    %v600 = vpop.permute.xlu0 %599
    %601 = vrot.lane.b32.xlu0 %v188, 72
    %v602 = vpop.permute.xlu0 %601
    %v604 = vsel %vm166, %v600, 0
    %v607 = vsel %vm166, %v602, 0
    %609 = vmatpush.bf16.xpose.msra.mxu0 0
    %610 = vmatpush.bf16.xpose.msra.mxu0 0
    %611 = vmatpush.bf16.xpose.msra.mxu0 0
    %612 = vmatpush.bf16.xpose.msra.mxu0 0
    %613 = vmatpush.bf16.xpose.msra.mxu0 0
    %614 = vmatpush.bf16.xpose.msra.mxu0 0
    %615 = vmatpush.bf16.xpose.msra.mxu0 0
    %616 = vmatpush.bf16.xpose.msra.mxu0 %v607
    %617 = vmatmul.bf16.gmra.mxu0 %v604
    %v618 = vpop.f32.mrf.mxu0
    %v619 = vadd.f32 0.0, %v618
    %v620 = vpop.f32.mrf.mxu0
    %621 = vdwg.mxu0
    %v622 = vmul.f32 %v596, 0.35355338
    %v623 = vmul.f32 %v619, 0.35355338
    %v624 = vsel %vm166, %v622, -inf
    %625 = vmax.xlane.f32.xlu0 %v624
    %v626 = vpop.xlane.xlu0 %625
    %v627 = vsel %vm166, %v623, -inf
    %628 = vmax.xlane.f32.xlu0 %v627
    %v629 = vpop.xlane.xlu0 %628
    %v630 = vsub.f32 %v622, %v626
    %v631 = vsub.f32 %v623, %v629
    %v632 = vmul.f32 %v630, 1.442695
    %v633 = vpow.pop %v632
    %v634 = vmul.f32 %v631, 1.442695
    %v635 = vpow.pop %v634
    %v636 = vsel %vm166, %v633, 0.0
    %637 = vadd.xlane.f32.xlu0 %v636
    %v638 = vpop.xlane.xlu0 %637
    %v639 = vsel %vm166, %v635, 0.0
    %640 = vadd.xlane.f32.xlu0 %v639
    %v641 = vpop.xlane.xlu0 %640
    %v642 = vrcp.pop %v638
    %v643 = vrcp.pop %v641
    %v644 = vmul.f32 %v633, %v642
    %v645 = vmul.f32 %v635, %v643
    %v646 = vpack.c.bf16 %v644, %v644
    %v647 = vpack.c.bf16 %v645, %v645
    %648 = vrot.lane.b32.xlu0 %v163, 40
    %v649 = vpop.permute.xlu0 %648
    %v651 = vsel %vm166, %v646, 0
    %v654 = vsel %vm241, %v649, 0
    %656 = vmatpush.bf16.msra.mxu0 0
    %657 = vmatpush.bf16.msra.mxu0 0
    %658 = vmatpush.bf16.msra.mxu0 0
    %659 = vmatpush.bf16.msra.mxu0 0
    %660 = vmatpush.bf16.msra.mxu0 0
    %661 = vmatpush.bf16.msra.mxu0 0
    %662 = vmatpush.bf16.msra.mxu0 0
    %663 = vmatpush.bf16.msra.mxu0 %v654
    %664 = vmatmul.bf16.gmra.mxu0 %v651
    %v665 = vpop.f32.mrf.mxu0
    %v666 = vadd.f32 0.0, %v665
    %v667 = vpop.f32.mrf.mxu0
    %668 = vdwg.mxu0
    %669 = vrot.lane.b32.xlu0 %v188, 40
    %v670 = vpop.permute.xlu0 %669
    %v672 = vsel %vm166, %v647, 0
    %v675 = vsel %vm241, %v670, 0
    %677 = vmatpush.bf16.msra.mxu0 0
    %678 = vmatpush.bf16.msra.mxu0 0
    %679 = vmatpush.bf16.msra.mxu0 0
    %680 = vmatpush.bf16.msra.mxu0 0
    %681 = vmatpush.bf16.msra.mxu0 0
    %682 = vmatpush.bf16.msra.mxu0 0
    %683 = vmatpush.bf16.msra.mxu0 0
    %684 = vmatpush.bf16.msra.mxu0 %v675
    %685 = vmatmul.bf16.gmra.mxu0 %v672
    %v686 = vpop.f32.mrf.mxu0
    %v687 = vadd.f32 0.0, %v686
    %v688 = vpop.f32.mrf.mxu0
    %689 = vdwg.mxu0
    %v690 = vpack.c.bf16 %v687, %v666
    %v692 = vsel %vm166, %v690, 0
    %v695 = vsel %vm241, %v153, 0
    %697 = vmatpush.bf16.msra.mxu0 0
    %698 = vmatpush.bf16.msra.mxu0 0
    %699 = vmatpush.bf16.msra.mxu0 0
    %700 = vmatpush.bf16.msra.mxu0 0
    %701 = vmatpush.bf16.msra.mxu0 0
    %702 = vmatpush.bf16.msra.mxu0 0
    %703 = vmatpush.bf16.msra.mxu0 0
    %704 = vmatpush.bf16.msra.mxu0 %v695
    %705 = vmatmul.bf16.gmra.mxu0 %v692
    %v706 = vpop.f32.mrf.mxu0
    %v707 = vadd.f32 0.0, %v706
    %v708 = vpop.f32.mrf.mxu0
    %v709 = vadd.f32 0.0, %v708
    %710 = vdwg.mxu0
    %v711 = vadd.f32 %v574, %v707
    %v712 = vadd.f32 %v575, %v709
    %v713 = vadd.f32 %v109, %v711
    %v714 = vadd.f32 %v110, %v712
    %v715 = vld [vmem:[%s7] sm:$0x1]
    %v716 = vld [vmem:[%s8] sm:$0x1]
    %v717 = vsel %vm132, %v713, 0.0
    %718 = vadd.xlane.f32.xlu0 %v717
    %v719 = vpop.xlane.xlu0 %718
    %v720 = vsel %vm132, %v714, 0.0
    %721 = vadd.xlane.f32.xlu0 %v720
    %v722 = vpop.xlane.xlu0 %721
    %v723 = vrcp.pop 32.0
    %v724 = vmul.f32 32.0, %v723
    %v725 = vsub.f32 1.0, %v724
    %v726 = vmul.f32 %v723, %v725
    %v727 = vadd.f32 %v723, %v726
    %vm728 = vweird.f32 %v723
    %v729 = vsel %vm728, %v723, %v727
    %v730 = vmul.f32 %v719, %v729
    %v731 = vmul.f32 %v722, %v729
    %v732 = vsub.f32 %v713, %v730
    %v733 = vsub.f32 %v714, %v731
    %v734 = vmul.f32 %v732, %v732
    %v735 = vmul.f32 %v733, %v733
    %v736 = vsel %vm132, %v734, 0.0
    %737 = vadd.xlane.f32.xlu0 %v736
    %v738 = vpop.xlane.xlu0 %737
    %v739 = vsel %vm132, %v735, 0.0
    %740 = vadd.xlane.f32.xlu0 %v739
    %v741 = vpop.xlane.xlu0 %740
    %v742 = vmul.f32 %v738, %v729
    %v743 = vmul.f32 %v741, %v729
    %v744 = vadd.f32 %v742, 1e-05
    %v745 = vadd.f32 %v743, 1e-05
    %v746 = vrsqrt.pop %v744
    %v747 = vmul.f32 %v746, %v744
    %v748 = vmul.f32 %v747, %v746
    %v749 = vmul.f32 0.5, %v748
    %v750 = vsub.f32 1.5, %v749
    %v751 = vmul.f32 %v746, %v750
    %vm752 = vweird.f32 %v744
    %vm753 = vweird.f32 %v746
    %vm754 = vmor %vm752, %vm753
    %v755 = vsel %vm754, %v746, %v751
    %v756 = vrsqrt.pop %v745
    %v757 = vmul.f32 %v756, %v745
    %v758 = vmul.f32 %v757, %v756
    %v759 = vmul.f32 0.5, %v758
    %v760 = vsub.f32 1.5, %v759
    %v761 = vmul.f32 %v756, %v760
    %vm762 = vweird.f32 %v745
    %vm763 = vweird.f32 %v756
    %vm764 = vmor %vm762, %vm763
    %v765 = vsel %vm764, %v756, %v761
    %v766 = vmul.f32 %v732, %v755
    %v767 = vmul.f32 %v733, %v765
    %v769 = vperm.slane %v715, 0
    %v771 = vmul.f32 %v766, %v769
    %v772 = vmul.f32 %v767, %v769
    %v774 = vperm.slane %v716, 0
    %v776 = vadd.f32 %v771, %v774
    %v777 = vadd.f32 %v772, %v774
    %v778 = vpack.c.bf16 %v777, %v776
    %v779 = vld [vmem:[%s9] sm:$0xf]
    %v780 = vld [vmem:[%s9 + $0x4] sm:$0xf]
    %v781 = vld [vmem:[%s9 + $0x8] sm:$0xf]
    %v782 = vld [vmem:[%s9 + $0xc] sm:$0xf]
    %v783 = vld [vmem:[%s10] sm:$0x1]
    %v785 = vperm.slane %v783, 0
    %v791 = vunpack.c.l.b16 %v779
    %v792 = vunpack.c.l.b16 %v780
    %v793 = vunpack.c.l.b16 %v781
    %v794 = vunpack.c.l.b16 %v782
    %v795 = vpack.c.b16 %v792, %v791
    %v796 = vpack.c.b16 %v794, %v793
    %v800 = vsel %vm132, %v778, 0
    %802 = vmatpush.bf16.msra.mxu0 0
    %803 = vmatpush.bf16.msra.mxu0 0
    %804 = vmatpush.bf16.msra.mxu0 0
    %805 = vmatpush.bf16.msra.mxu0 0
    %806 = vmatpush.bf16.msra.mxu0 0
    %807 = vmatpush.bf16.msra.mxu0 0
    %808 = vmatpush.bf16.msra.mxu0 %v796
    %809 = vmatpush.bf16.msra.mxu0 %v795
    %810 = vmatmul.bf16.gmra.mxu0 %v800
    %v811 = vpop.f32.mrf.mxu0
    %v812 = vadd.f32 %v785, %v811
    %v813 = vpop.f32.mrf.mxu0
    %v814 = vadd.f32 %v785, %v813
    %815 = vdwg.mxu0
    %v816 = vmax.f32 %v812, 0.0
    %v817 = vmax.f32 %v814, 0.0
    %v818 = vpack.c.bf16 %v817, %v816
    %v819 = vld [vmem:[%s11] sm:$0xf]
    %v820 = vld [vmem:[%s11 + $0x4] sm:$0xf]
    %v821 = vld [vmem:[%s11 + $0x8] sm:$0xf]
    %v822 = vld [vmem:[%s11 + $0xc] sm:$0xf]
    %v823 = vld [vmem:[%s11 + $0x10] sm:$0xf]
    %v824 = vld [vmem:[%s11 + $0x14] sm:$0xf]
    %v825 = vld [vmem:[%s11 + $0x18] sm:$0xf]
    %v826 = vld [vmem:[%s11 + $0x1c] sm:$0xf]
    %v827 = vld [vmem:[%s12] sm:$0x1]
    %v829 = vperm.slane %v827, 0
    %v839 = vunpack.c.l.b16 %v819
    %v840 = vunpack.c.l.b16 %v820
    %v841 = vunpack.c.l.b16 %v821
    %v842 = vunpack.c.l.b16 %v822
    %v843 = vunpack.c.l.b16 %v823
    %v844 = vunpack.c.l.b16 %v824
    %v845 = vunpack.c.l.b16 %v825
    %v846 = vunpack.c.l.b16 %v826
    %v847 = vpack.c.b16 %v840, %v839
    %v848 = vpack.c.b16 %v842, %v841
    %v849 = vpack.c.b16 %v844, %v843
    %v850 = vpack.c.b16 %v846, %v845
    %vm855 = vcmask 523264
    %v857 = vsel %vm855, %v818, 0
    %859 = vmatpush.bf16.msra.mxu0 0
    %860 = vmatpush.bf16.msra.mxu0 0
    %861 = vmatpush.bf16.msra.mxu0 0
    %862 = vmatpush.bf16.msra.mxu0 0
    %863 = vmatpush.bf16.msra.mxu0 %v850
    %864 = vmatpush.bf16.msra.mxu0 %v849
    %865 = vmatpush.bf16.msra.mxu0 %v848
    %866 = vmatpush.bf16.msra.mxu0 %v847
    %867 = vmatmul.bf16.gmra.mxu0 %v857
    %v868 = vpop.f32.mrf.mxu0
    %v869 = vadd.f32 %v829, %v868
    %v870 = vpop.f32.mrf.mxu0
    %v871 = vadd.f32 %v829, %v870
    %872 = vdwg.mxu0
    %v873 = vadd.f32 %v776, %v869
    %v874 = vadd.f32 %v777, %v871
    %v875 = vld [vmem:[%s13] sm:$0x1]
    %v876 = vld [vmem:[%s14] sm:$0x1]
    %v877 = vsel %vm132, %v873, 0.0
    %878 = vadd.xlane.f32.xlu0 %v877
    %v879 = vpop.xlane.xlu0 %878
    %v880 = vsel %vm132, %v874, 0.0
    %881 = vadd.xlane.f32.xlu0 %v880
    %v882 = vpop.xlane.xlu0 %881
    %v883 = vmul.f32 %v879, %v729
    %v884 = vmul.f32 %v882, %v729
    %v885 = vsub.f32 %v873, %v883
    %v886 = vsub.f32 %v874, %v884
    %v887 = vmul.f32 %v885, %v885
    %v888 = vmul.f32 %v886, %v886
    %v889 = vsel %vm132, %v887, 0.0
    %890 = vadd.xlane.f32.xlu0 %v889
    %v891 = vpop.xlane.xlu0 %890
    %v892 = vsel %vm132, %v888, 0.0
    %893 = vadd.xlane.f32.xlu0 %v892
    %v894 = vpop.xlane.xlu0 %893
    %v895 = vmul.f32 %v891, %v729
    %v896 = vmul.f32 %v894, %v729
    %v897 = vadd.f32 %v895, 1e-05
    %v898 = vadd.f32 %v896, 1e-05
    %v899 = vrsqrt.pop %v897
    %v900 = vmul.f32 %v899, %v897
    %v901 = vmul.f32 %v900, %v899
    %v902 = vmul.f32 0.5, %v901
    %v903 = vsub.f32 1.5, %v902
    %v904 = vmul.f32 %v899, %v903
    %vm905 = vweird.f32 %v897
    %vm906 = vweird.f32 %v899
    %vm907 = vmor %vm905, %vm906
    %v908 = vsel %vm907, %v899, %v904
    %v909 = vrsqrt.pop %v898
    %v910 = vmul.f32 %v909, %v898
    %v911 = vmul.f32 %v910, %v909
    %v912 = vmul.f32 0.5, %v911
    %v913 = vsub.f32 1.5, %v912
    %v914 = vmul.f32 %v909, %v913
    %vm915 = vweird.f32 %v898
    %vm916 = vweird.f32 %v909
    %vm917 = vmor %vm915, %vm916
    %v918 = vsel %vm917, %v909, %v914
    %v919 = vmul.f32 %v885, %v908
    %v920 = vmul.f32 %v886, %v918
    %v922 = vperm.slane %v875, 0
    %v924 = vmul.f32 %v919, %v922
    %v925 = vmul.f32 %v920, %v922
    %v927 = vperm.slane %v876, 0
    %v929 = vadd.f32 %v924, %v927
    %v930 = vadd.f32 %v925, %v927
    %v931 = vpack.c.bf16 %v930, %v929
    %s932 = scalar_lea.vmem %s3, 16
    %v933 = vld [vmem:[%s932] sm:$0xf]
    %v934 = vld [vmem:[%s932 + $0x4] sm:$0xf]
    %v935 = vld [vmem:[%s932 + $0x8] sm:$0xf]
    %v936 = vld [vmem:[%s932 + $0xc] sm:$0xf]
    %s937 = scalar_lea.vmem %s4, 1
    %v938 = vld [vmem:[%s937] sm:$0x1]
    %v940 = vperm.slane %v938, 0
    %v946 = vunpack.c.l.b16 %v933
    %v947 = vunpack.c.l.b16 %v934
    %v948 = vunpack.c.l.b16 %v935
    %v949 = vunpack.c.l.b16 %v936
    %v950 = vpack.c.b16 %v947, %v946
    %v951 = vpack.c.b16 %v949, %v948
    %v955 = vsel %vm132, %v931, 0
    %957 = vmatpush.bf16.msra.mxu0 0
    %958 = vmatpush.bf16.msra.mxu0 0
    %959 = vmatpush.bf16.msra.mxu0 0
    %960 = vmatpush.bf16.msra.mxu0 0
    %961 = vmatpush.bf16.msra.mxu0 0
    %962 = vmatpush.bf16.msra.mxu0 0
    %963 = vmatpush.bf16.msra.mxu0 %v951
    %964 = vmatpush.bf16.msra.mxu0 %v950
    %965 = vmatmul.bf16.gmra.mxu0 %v955
    %v966 = vpop.f32.mrf.mxu0
    %v967 = vadd.f32 %v940, %v966
    %v968 = vpop.f32.mrf.mxu0
    %v969 = vadd.f32 %v940, %v968
    %970 = vdwg.mxu0
    %s971 = scalar_lea.vmem %s5, 16
    %v972 = vld [vmem:[%s971] sm:$0xf]
    %v973 = vld [vmem:[%s971 + $0x4] sm:$0xf]
    %v974 = vld [vmem:[%s971 + $0x8] sm:$0xf]
    %v975 = vld [vmem:[%s971 + $0xc] sm:$0xf]
    %s976 = scalar_lea.vmem %s6, 1
    %v977 = vld [vmem:[%s976] sm:$0x1]
    %v979 = vperm.slane %v977, 0
    %v981 = vadd.f32 %v979, 0.0
    %v982 = vpack.c.bf16 %v967, %v967
    %v983 = vpack.c.bf16 %v969, %v969
    %v985 = vunpack.c.l.b16 %v982
    %v986 = vpack.c.b16 %v985, %v985
    %987 = vrot.lane.b32.xlu0 %v986, 96
    %v988 = vpop.permute.xlu0 %987
    %v990 = vsel %vm166, %v982, 0
    %v993 = vsel %vm166, %v988, 0
    %995 = vmatpush.bf16.xpose.msra.mxu0 0
    %996 = vmatpush.bf16.xpose.msra.mxu0 0
    %997 = vmatpush.bf16.xpose.msra.mxu0 0
    %998 = vmatpush.bf16.xpose.msra.mxu0 0
    %999 = vmatpush.bf16.xpose.msra.mxu0 0
    %1000 = vmatpush.bf16.xpose.msra.mxu0 0
    %1001 = vmatpush.bf16.xpose.msra.mxu0 0
    %1002 = vmatpush.bf16.xpose.msra.mxu0 %v993
    %1003 = vmatmul.bf16.gmra.mxu0 %v990
    %v1004 = vpop.f32.mrf.mxu0
    %v1005 = vadd.f32 0.0, %v1004
    %v1006 = vpop.f32.mrf.mxu0
    %1007 = vdwg.mxu0
    %v1009 = vunpack.c.l.b16 %v983
    %v1010 = vpack.c.b16 %v1009, %v1009
    %1011 = vrot.lane.b32.xlu0 %v1010, 96
    %v1012 = vpop.permute.xlu0 %1011
    %v1014 = vsel %vm166, %v983, 0
    %v1017 = vsel %vm166, %v1012, 0
    %1019 = vmatpush.bf16.xpose.msra.mxu0 0
    %1020 = vmatpush.bf16.xpose.msra.mxu0 0
    %1021 = vmatpush.bf16.xpose.msra.mxu0 0
    %1022 = vmatpush.bf16.xpose.msra.mxu0 0
    %1023 = vmatpush.bf16.xpose.msra.mxu0 0
    %1024 = vmatpush.bf16.xpose.msra.mxu0 0
    %1025 = vmatpush.bf16.xpose.msra.mxu0 0
    %1026 = vmatpush.bf16.xpose.msra.mxu0 %v1017
    %1027 = vmatmul.bf16.gmra.mxu0 %v1014
    %v1028 = vpop.f32.mrf.mxu0
    %v1029 = vadd.f32 0.0, %v1028
    %v1030 = vpop.f32.mrf.mxu0
    %1031 = vdwg.mxu0
    %v1032 = vmul.f32 %v1005, 0.35355338
    %v1033 = vmul.f32 %v1029, 0.35355338
    %v1034 = vsel %vm166, %v1032, -inf
    %1035 = vmax.xlane.f32.xlu0 %v1034
    %v1036 = vpop.xlane.xlu0 %1035
    %v1037 = vsel %vm166, %v1033, -inf
    %1038 = vmax.xlane.f32.xlu0 %v1037
    %v1039 = vpop.xlane.xlu0 %1038
    %v1040 = vsub.f32 %v1032, %v1036
    %v1041 = vsub.f32 %v1033, %v1039
    %v1042 = vmul.f32 %v1040, 1.442695
    %v1043 = vpow.pop %v1042
    %v1044 = vmul.f32 %v1041, 1.442695
    %v1045 = vpow.pop %v1044
    %v1046 = vsel %vm166, %v1043, 0.0
    %1047 = vadd.xlane.f32.xlu0 %v1046
    %v1048 = vpop.xlane.xlu0 %1047
    %v1049 = vsel %vm166, %v1045, 0.0
    %1050 = vadd.xlane.f32.xlu0 %v1049
    %v1051 = vpop.xlane.xlu0 %1050
    %v1052 = vrcp.pop %v1048
    %v1053 = vrcp.pop %v1051
    %v1054 = vmul.f32 %v1043, %v1052
    %v1055 = vmul.f32 %v1045, %v1053
    %v1056 = vpack.c.bf16 %v1054, %v1054
    %v1057 = vpack.c.bf16 %v1055, %v1055
    %1058 = vrot.lane.b32.xlu0 %v986, 64
    %v1059 = vpop.permute.xlu0 %1058
    %v1061 = vsel %vm166, %v1056, 0
    %v1064 = vsel %vm241, %v1059, 0
    %1066 = vmatpush.bf16.msra.mxu0 0
    %1067 = vmatpush.bf16.msra.mxu0 0
    %1068 = vmatpush.bf16.msra.mxu0 0
    %1069 = vmatpush.bf16.msra.mxu0 0
    %1070 = vmatpush.bf16.msra.mxu0 0
    %1071 = vmatpush.bf16.msra.mxu0 0
    %1072 = vmatpush.bf16.msra.mxu0 0
    %1073 = vmatpush.bf16.msra.mxu0 %v1064
    %1074 = vmatmul.bf16.gmra.mxu0 %v1061
    %v1075 = vpop.f32.mrf.mxu0
    %v1076 = vadd.f32 0.0, %v1075
    %v1077 = vpop.f32.mrf.mxu0
    %1078 = vdwg.mxu0
    %1079 = vrot.lane.b32.xlu0 %v1010, 64
    %v1080 = vpop.permute.xlu0 %1079
    %v1082 = vsel %vm166, %v1057, 0
    %v1085 = vsel %vm241, %v1080, 0
    %1087 = vmatpush.bf16.msra.mxu0 0
    %1088 = vmatpush.bf16.msra.mxu0 0
    %1089 = vmatpush.bf16.msra.mxu0 0
    %1090 = vmatpush.bf16.msra.mxu0 0
    %1091 = vmatpush.bf16.msra.mxu0 0
    %1092 = vmatpush.bf16.msra.mxu0 0
    %1093 = vmatpush.bf16.msra.mxu0 0
    %1094 = vmatpush.bf16.msra.mxu0 %v1085
    %1095 = vmatmul.bf16.gmra.mxu0 %v1082
    %v1096 = vpop.f32.mrf.mxu0
    %v1097 = vadd.f32 0.0, %v1096
    %v1098 = vpop.f32.mrf.mxu0
    %1099 = vdwg.mxu0
    %v1100 = vpack.c.bf16 %v1097, %v1076
    %v1102 = vsel %vm166, %v1100, 0
    %v1105 = vsel %vm241, %v972, 0
    %1107 = vmatpush.bf16.msra.mxu0 0
    %1108 = vmatpush.bf16.msra.mxu0 0
    %1109 = vmatpush.bf16.msra.mxu0 0
    %1110 = vmatpush.bf16.msra.mxu0 0
    %1111 = vmatpush.bf16.msra.mxu0 0
    %1112 = vmatpush.bf16.msra.mxu0 0
    %1113 = vmatpush.bf16.msra.mxu0 0
    %1114 = vmatpush.bf16.msra.mxu0 %v1105
    %1115 = vmatmul.bf16.gmra.mxu0 %v1102
    %v1116 = vpop.f32.mrf.mxu0
    %v1117 = vadd.f32 0.0, %v1116
    %v1118 = vpop.f32.mrf.mxu0
    %v1119 = vadd.f32 0.0, %v1118
    %1120 = vdwg.mxu0
    %v1121 = vadd.f32 %v981, %v1117
    %v1122 = vadd.f32 %v981, %v1119
    %1123 = vrot.lane.b32.xlu0 %v986, 120
    %v1124 = vpop.permute.xlu0 %1123
    %1125 = vrot.lane.b32.xlu0 %v986, 88
    %v1126 = vpop.permute.xlu0 %1125
    %v1128 = vsel %vm166, %v1124, 0
    %v1131 = vsel %vm166, %v1126, 0
    %1133 = vmatpush.bf16.xpose.msra.mxu0 0
    %1134 = vmatpush.bf16.xpose.msra.mxu0 0
    %1135 = vmatpush.bf16.xpose.msra.mxu0 0
    %1136 = vmatpush.bf16.xpose.msra.mxu0 0
    %1137 = vmatpush.bf16.xpose.msra.mxu0 0
    %1138 = vmatpush.bf16.xpose.msra.mxu0 0
    %1139 = vmatpush.bf16.xpose.msra.mxu0 0
    %1140 = vmatpush.bf16.xpose.msra.mxu0 %v1131
    %1141 = vmatmul.bf16.gmra.mxu0 %v1128
    %v1142 = vpop.f32.mrf.mxu0
    %v1143 = vadd.f32 0.0, %v1142
    %v1144 = vpop.f32.mrf.mxu0
    %1145 = vdwg.mxu0
    %1146 = vrot.lane.b32.xlu0 %v1010, 120
    %v1147 = vpop.permute.xlu0 %1146
    %1148 = vrot.lane.b32.xlu0 %v1010, 88
    %v1149 = vpop.permute.xlu0 %1148
    %v1151 = vsel %vm166, %v1147, 0
    %v1154 = vsel %vm166, %v1149, 0
    %1156 = vmatpush.bf16.xpose.msra.mxu0 0
    %1157 = vmatpush.bf16.xpose.msra.mxu0 0
    %1158 = vmatpush.bf16.xpose.msra.mxu0 0
    %1159 = vmatpush.bf16.xpose.msra.mxu0 0
    %1160 = vmatpush.bf16.xpose.msra.mxu0 0
    %1161 = vmatpush.bf16.xpose.msra.mxu0 0
    %1162 = vmatpush.bf16.xpose.msra.mxu0 0
    %1163 = vmatpush.bf16.xpose.msra.mxu0 %v1154
    %1164 = vmatmul.bf16.gmra.mxu0 %v1151
    %v1165 = vpop.f32.mrf.mxu0
    %v1166 = vadd.f32 0.0, %v1165
    %v1167 = vpop.f32.mrf.mxu0
    %1168 = vdwg.mxu0
    %v1169 = vmul.f32 %v1143, 0.35355338
    %v1170 = vmul.f32 %v1166, 0.35355338
    %v1171 = vsel %vm166, %v1169, -inf
    %1172 = vmax.xlane.f32.xlu0 %v1171
    %v1173 = vpop.xlane.xlu0 %1172
    %v1174 = vsel %vm166, %v1170, -inf
    %1175 = vmax.xlane.f32.xlu0 %v1174
    %v1176 = vpop.xlane.xlu0 %1175
    %v1177 = vsub.f32 %v1169, %v1173
    %v1178 = vsub.f32 %v1170, %v1176
    %v1179 = vmul.f32 %v1177, 1.442695
    %v1180 = vpow.pop %v1179
    %v1181 = vmul.f32 %v1178, 1.442695
    %v1182 = vpow.pop %v1181
    %v1183 = vsel %vm166, %v1180, 0.0
    %1184 = vadd.xlane.f32.xlu0 %v1183
    %v1185 = vpop.xlane.xlu0 %1184
    %v1186 = vsel %vm166, %v1182, 0.0
    %1187 = vadd.xlane.f32.xlu0 %v1186
    %v1188 = vpop.xlane.xlu0 %1187
    %v1189 = vrcp.pop %v1185
    %v1190 = vrcp.pop %v1188
    %v1191 = vmul.f32 %v1180, %v1189
    %v1192 = vmul.f32 %v1182, %v1190
    %v1193 = vpack.c.bf16 %v1191, %v1191
    %v1194 = vpack.c.bf16 %v1192, %v1192
    %1195 = vrot.lane.b32.xlu0 %v986, 56
    %v1196 = vpop.permute.xlu0 %1195
    %v1198 = vsel %vm166, %v1193, 0
    %v1201 = vsel %vm241, %v1196, 0
    %1203 = vmatpush.bf16.msra.mxu0 0
    %1204 = vmatpush.bf16.msra.mxu0 0
    %1205 = vmatpush.bf16.msra.mxu0 0
    %1206 = vmatpush.bf16.msra.mxu0 0
    %1207 = vmatpush.bf16.msra.mxu0 0
    %1208 = vmatpush.bf16.msra.mxu0 0
    %1209 = vmatpush.bf16.msra.mxu0 0
    %1210 = vmatpush.bf16.msra.mxu0 %v1201
    %1211 = vmatmul.bf16.gmra.mxu0 %v1198
    %v1212 = vpop.f32.mrf.mxu0
    %v1213 = vadd.f32 0.0, %v1212
    %v1214 = vpop.f32.mrf.mxu0
    %1215 = vdwg.mxu0
    %1216 = vrot.lane.b32.xlu0 %v1010, 56
    %v1217 = vpop.permute.xlu0 %1216
    %v1219 = vsel %vm166, %v1194, 0
    %v1222 = vsel %vm241, %v1217, 0
    %1224 = vmatpush.bf16.msra.mxu0 0
    %1225 = vmatpush.bf16.msra.mxu0 0
    %1226 = vmatpush.bf16.msra.mxu0 0
    %1227 = vmatpush.bf16.msra.mxu0 0
    %1228 = vmatpush.bf16.msra.mxu0 0
    %1229 = vmatpush.bf16.msra.mxu0 0
    %1230 = vmatpush.bf16.msra.mxu0 0
    %1231 = vmatpush.bf16.msra.mxu0 %v1222
    %1232 = vmatmul.bf16.gmra.mxu0 %v1219
    %v1233 = vpop.f32.mrf.mxu0
    %v1234 = vadd.f32 0.0, %v1233
    %v1235 = vpop.f32.mrf.mxu0
    %1236 = vdwg.mxu0
    %v1237 = vpack.c.bf16 %v1234, %v1213
    %v1239 = vsel %vm166, %v1237, 0
    %v1242 = vsel %vm241, %v973, 0
    %1244 = vmatpush.bf16.msra.mxu0 0
    %1245 = vmatpush.bf16.msra.mxu0 0
    %1246 = vmatpush.bf16.msra.mxu0 0
    %1247 = vmatpush.bf16.msra.mxu0 0
    %1248 = vmatpush.bf16.msra.mxu0 0
    %1249 = vmatpush.bf16.msra.mxu0 0
    %1250 = vmatpush.bf16.msra.mxu0 0
    %1251 = vmatpush.bf16.msra.mxu0 %v1242
    %1252 = vmatmul.bf16.gmra.mxu0 %v1239
    %v1253 = vpop.f32.mrf.mxu0
    %v1254 = vadd.f32 0.0, %v1253
    %v1255 = vpop.f32.mrf.mxu0
    %v1256 = vadd.f32 0.0, %v1255
    %1257 = vdwg.mxu0
    %v1258 = vadd.f32 %v1121, %v1254
    %v1259 = vadd.f32 %v1122, %v1256
    %1260 = vrot.lane.b32.xlu0 %v986, 112
    %v1261 = vpop.permute.xlu0 %1260
    %1262 = vrot.lane.b32.xlu0 %v986, 80
    %v1263 = vpop.permute.xlu0 %1262
    %v1265 = vsel %vm166, %v1261, 0
    %v1268 = vsel %vm166, %v1263, 0
    %1270 = vmatpush.bf16.xpose.msra.mxu0 0
    %1271 = vmatpush.bf16.xpose.msra.mxu0 0
    %1272 = vmatpush.bf16.xpose.msra.mxu0 0
    %1273 = vmatpush.bf16.xpose.msra.mxu0 0
    %1274 = vmatpush.bf16.xpose.msra.mxu0 0
    %1275 = vmatpush.bf16.xpose.msra.mxu0 0
    %1276 = vmatpush.bf16.xpose.msra.mxu0 0
    %1277 = vmatpush.bf16.xpose.msra.mxu0 %v1268
    %1278 = vmatmul.bf16.gmra.mxu0 %v1265
    %v1279 = vpop.f32.mrf.mxu0
    %v1280 = vadd.f32 0.0, %v1279
    %v1281 = vpop.f32.mrf.mxu0
    %1282 = vdwg.mxu0
    %1283 = vrot.lane.b32.xlu0 %v1010, 112
    %v1284 = vpop.permute.xlu0 %1283
    %1285 = vrot.lane.b32.xlu0 %v1010, 80
    %v1286 = vpop.permute.xlu0 %1285
    %v1288 = vsel %vm166, %v1284, 0
    %v1291 = vsel %vm166, %v1286, 0
    %1293 = vmatpush.bf16.xpose.msra.mxu0 0
    %1294 = vmatpush.bf16.xpose.msra.mxu0 0
    %1295 = vmatpush.bf16.xpose.msra.mxu0 0
    %1296 = vmatpush.bf16.xpose.msra.mxu0 0
    %1297 = vmatpush.bf16.xpose.msra.mxu0 0
    %1298 = vmatpush.bf16.xpose.msra.mxu0 0
    %1299 = vmatpush.bf16.xpose.msra.mxu0 0
    %1300 = vmatpush.bf16.xpose.msra.mxu0 %v1291
    %1301 = vmatmul.bf16.gmra.mxu0 %v1288
    %v1302 = vpop.f32.mrf.mxu0
    %v1303 = vadd.f32 0.0, %v1302
    %v1304 = vpop.f32.mrf.mxu0
    %1305 = vdwg.mxu0
    %v1306 = vmul.f32 %v1280, 0.35355338
    %v1307 = vmul.f32 %v1303, 0.35355338
    %v1308 = vsel %vm166, %v1306, -inf
    %1309 = vmax.xlane.f32.xlu0 %v1308
    %v1310 = vpop.xlane.xlu0 %1309
    %v1311 = vsel %vm166, %v1307, -inf
    %1312 = vmax.xlane.f32.xlu0 %v1311
    %v1313 = vpop.xlane.xlu0 %1312
    %v1314 = vsub.f32 %v1306, %v1310
    %v1315 = vsub.f32 %v1307, %v1313
    %v1316 = vmul.f32 %v1314, 1.442695
    %v1317 = vpow.pop %v1316
    %v1318 = vmul.f32 %v1315, 1.442695
    %v1319 = vpow.pop %v1318
    %v1320 = vsel %vm166, %v1317, 0.0
    %1321 = vadd.xlane.f32.xlu0 %v1320
    %v1322 = vpop.xlane.xlu0 %1321
    %v1323 = vsel %vm166, %v1319, 0.0
    %1324 = vadd.xlane.f32.xlu0 %v1323
    %v1325 = vpop.xlane.xlu0 %1324
    %v1326 = vrcp.pop %v1322
    %v1327 = vrcp.pop %v1325
    %v1328 = vmul.f32 %v1317, %v1326
    %v1329 = vmul.f32 %v1319, %v1327
    %v1330 = vpack.c.bf16 %v1328, %v1328
    %v1331 = vpack.c.bf16 %v1329, %v1329
    %1332 = vrot.lane.b32.xlu0 %v986, 48
    %v1333 = vpop.permute.xlu0 %1332
    %v1335 = vsel %vm166, %v1330, 0
    %v1338 = vsel %vm241, %v1333, 0
    %1340 = vmatpush.bf16.msra.mxu0 0
    %1341 = vmatpush.bf16.msra.mxu0 0
    %1342 = vmatpush.bf16.msra.mxu0 0
    %1343 = vmatpush.bf16.msra.mxu0 0
    %1344 = vmatpush.bf16.msra.mxu0 0
    %1345 = vmatpush.bf16.msra.mxu0 0
    %1346 = vmatpush.bf16.msra.mxu0 0
    %1347 = vmatpush.bf16.msra.mxu0 %v1338
    %1348 = vmatmul.bf16.gmra.mxu0 %v1335
    %v1349 = vpop.f32.mrf.mxu0
    %v1350 = vadd.f32 0.0, %v1349
    %v1351 = vpop.f32.mrf.mxu0
    %1352 = vdwg.mxu0
    %1353 = vrot.lane.b32.xlu0 %v1010, 48
    %v1354 = vpop.permute.xlu0 %1353
    %v1356 = vsel %vm166, %v1331, 0
    %v1359 = vsel %vm241, %v1354, 0
    %1361 = vmatpush.bf16.msra.mxu0 0
    %1362 = vmatpush.bf16.msra.mxu0 0
    %1363 = vmatpush.bf16.msra.mxu0 0
    %1364 = vmatpush.bf16.msra.mxu0 0
    %1365 = vmatpush.bf16.msra.mxu0 0
    %1366 = vmatpush.bf16.msra.mxu0 0
    %1367 = vmatpush.bf16.msra.mxu0 0
    %1368 = vmatpush.bf16.msra.mxu0 %v1359
    %1369 = vmatmul.bf16.gmra.mxu0 %v1356
    %v1370 = vpop.f32.mrf.mxu0
    %v1371 = vadd.f32 0.0, %v1370
    %v1372 = vpop.f32.mrf.mxu0
    %1373 = vdwg.mxu0
    %v1374 = vpack.c.bf16 %v1371, %v1350
    %v1376 = vsel %vm166, %v1374, 0
    %v1379 = vsel %vm241, %v974, 0
    %1381 = vmatpush.bf16.msra.mxu0 0
    %1382 = vmatpush.bf16.msra.mxu0 0
    %1383 = vmatpush.bf16.msra.mxu0 0
    %1384 = vmatpush.bf16.msra.mxu0 0
    %1385 = vmatpush.bf16.msra.mxu0 0
    %1386 = vmatpush.bf16.msra.mxu0 0
    %1387 = vmatpush.bf16.msra.mxu0 0
    %1388 = vmatpush.bf16.msra.mxu0 %v1379
    %1389 = vmatmul.bf16.gmra.mxu0 %v1376
    %v1390 = vpop.f32.mrf.mxu0
    %v1391 = vadd.f32 0.0, %v1390
    %v1392 = vpop.f32.mrf.mxu0
    %v1393 = vadd.f32 0.0, %v1392
    %1394 = vdwg.mxu0
    %v1395 = vadd.f32 %v1258, %v1391
    %v1396 = vadd.f32 %v1259, %v1393
    %1397 = vrot.lane.b32.xlu0 %v986, 104
    %v1398 = vpop.permute.xlu0 %1397
    %1399 = vrot.lane.b32.xlu0 %v986, 72
    %v1400 = vpop.permute.xlu0 %1399
    %v1402 = vsel %vm166, %v1398, 0
    %v1405 = vsel %vm166, %v1400, 0
    %1407 = vmatpush.bf16.xpose.msra.mxu0 0
    %1408 = vmatpush.bf16.xpose.msra.mxu0 0
    %1409 = vmatpush.bf16.xpose.msra.mxu0 0
    %1410 = vmatpush.bf16.xpose.msra.mxu0 0
    %1411 = vmatpush.bf16.xpose.msra.mxu0 0
    %1412 = vmatpush.bf16.xpose.msra.mxu0 0
    %1413 = vmatpush.bf16.xpose.msra.mxu0 0
    %1414 = vmatpush.bf16.xpose.msra.mxu0 %v1405
    %1415 = vmatmul.bf16.gmra.mxu0 %v1402
    %v1416 = vpop.f32.mrf.mxu0
    %v1417 = vadd.f32 0.0, %v1416
    %v1418 = vpop.f32.mrf.mxu0
    %1419 = vdwg.mxu0
    %1420 = vrot.lane.b32.xlu0 %v1010, 104
    %v1421 = vpop.permute.xlu0 %1420
    %1422 = vrot.lane.b32.xlu0 %v1010, 72
    %v1423 = vpop.permute.xlu0 %1422
    %v1425 = vsel %vm166, %v1421, 0
    %v1428 = vsel %vm166, %v1423, 0
    %1430 = vmatpush.bf16.xpose.msra.mxu0 0
    %1431 = vmatpush.bf16.xpose.msra.mxu0 0
    %1432 = vmatpush.bf16.xpose.msra.mxu0 0
    %1433 = vmatpush.bf16.xpose.msra.mxu0 0
    %1434 = vmatpush.bf16.xpose.msra.mxu0 0
    %1435 = vmatpush.bf16.xpose.msra.mxu0 0
    %1436 = vmatpush.bf16.xpose.msra.mxu0 0
    %1437 = vmatpush.bf16.xpose.msra.mxu0 %v1428
    %1438 = vmatmul.bf16.gmra.mxu0 %v1425
    %v1439 = vpop.f32.mrf.mxu0
    %v1440 = vadd.f32 0.0, %v1439
    %v1441 = vpop.f32.mrf.mxu0
    %1442 = vdwg.mxu0
    %v1443 = vmul.f32 %v1417, 0.35355338
    %v1444 = vmul.f32 %v1440, 0.35355338
    %v1445 = vsel %vm166, %v1443, -inf
    %1446 = vmax.xlane.f32.xlu0 %v1445
    %v1447 = vpop.xlane.xlu0 %1446
    %v1448 = vsel %vm166, %v1444, -inf
    %1449 = vmax.xlane.f32.xlu0 %v1448
    %v1450 = vpop.xlane.xlu0 %1449
    %v1451 = vsub.f32 %v1443, %v1447
    %v1452 = vsub.f32 %v1444, %v1450
    %v1453 = vmul.f32 %v1451, 1.442695
    %v1454 = vpow.pop %v1453
    %v1455 = vmul.f32 %v1452, 1.442695
    %v1456 = vpow.pop %v1455
    %v1457 = vsel %vm166, %v1454, 0.0
    %1458 = vadd.xlane.f32.xlu0 %v1457
    %v1459 = vpop.xlane.xlu0 %1458
    %v1460 = vsel %vm166, %v1456, 0.0
    %1461 = vadd.xlane.f32.xlu0 %v1460
    %v1462 = vpop.xlane.xlu0 %1461
    %v1463 = vrcp.pop %v1459
    %v1464 = vrcp.pop %v1462
    %v1465 = vmul.f32 %v1454, %v1463
    %v1466 = vmul.f32 %v1456, %v1464
    %v1467 = vpack.c.bf16 %v1465, %v1465
    %v1468 = vpack.c.bf16 %v1466, %v1466
    %1469 = vrot.lane.b32.xlu0 %v986, 40
    %v1470 = vpop.permute.xlu0 %1469
    %v1472 = vsel %vm166, %v1467, 0
    %v1475 = vsel %vm241, %v1470, 0
    %1477 = vmatpush.bf16.msra.mxu0 0
    %1478 = vmatpush.bf16.msra.mxu0 0
    %1479 = vmatpush.bf16.msra.mxu0 0
    %1480 = vmatpush.bf16.msra.mxu0 0
    %1481 = vmatpush.bf16.msra.mxu0 0
    %1482 = vmatpush.bf16.msra.mxu0 0
    %1483 = vmatpush.bf16.msra.mxu0 0
    %1484 = vmatpush.bf16.msra.mxu0 %v1475
    %1485 = vmatmul.bf16.gmra.mxu0 %v1472
    %v1486 = vpop.f32.mrf.mxu0
    %v1487 = vadd.f32 0.0, %v1486
    %v1488 = vpop.f32.mrf.mxu0
    %1489 = vdwg.mxu0
    %1490 = vrot.lane.b32.xlu0 %v1010, 40
    %v1491 = vpop.permute.xlu0 %1490
    %v1493 = vsel %vm166, %v1468, 0
    %v1496 = vsel %vm241, %v1491, 0
    %1498 = vmatpush.bf16.msra.mxu0 0
    %1499 = vmatpush.bf16.msra.mxu0 0
    %1500 = vmatpush.bf16.msra.mxu0 0
    %1501 = vmatpush.bf16.msra.mxu0 0
    %1502 = vmatpush.bf16.msra.mxu0 0
    %1503 = vmatpush.bf16.msra.mxu0 0
    %1504 = vmatpush.bf16.msra.mxu0 0
    %1505 = vmatpush.bf16.msra.mxu0 %v1496
    %1506 = vmatmul.bf16.gmra.mxu0 %v1493
    %v1507 = vpop.f32.mrf.mxu0
    %v1508 = vadd.f32 0.0, %v1507
    %v1509 = vpop.f32.mrf.mxu0
    %1510 = vdwg.mxu0
    %v1511 = vpack.c.bf16 %v1508, %v1487
    %v1513 = vsel %vm166, %v1511, 0
    %v1516 = vsel %vm241, %v975, 0
    %1518 = vmatpush.bf16.msra.mxu0 0
    %1519 = vmatpush.bf16.msra.mxu0 0
    %1520 = vmatpush.bf16.msra.mxu0 0
    %1521 = vmatpush.bf16.msra.mxu0 0
    %1522 = vmatpush.bf16.msra.mxu0 0
    %1523 = vmatpush.bf16.msra.mxu0 0
    %1524 = vmatpush.bf16.msra.mxu0 0
    %1525 = vmatpush.bf16.msra.mxu0 %v1516
    %1526 = vmatmul.bf16.gmra.mxu0 %v1513
    %v1527 = vpop.f32.mrf.mxu0
    %v1528 = vadd.f32 0.0, %v1527
    %v1529 = vpop.f32.mrf.mxu0
    %v1530 = vadd.f32 0.0, %v1529
    %1531 = vdwg.mxu0
    %v1532 = vadd.f32 %v1395, %v1528
    %v1533 = vadd.f32 %v1396, %v1530
    %v1534 = vadd.f32 %v929, %v1532
    %v1535 = vadd.f32 %v930, %v1533
    %s1536 = scalar_lea.vmem %s7, 1
    %v1537 = vld [vmem:[%s1536] sm:$0x1]
    %s1538 = scalar_lea.vmem %s8, 1
    %v1539 = vld [vmem:[%s1538] sm:$0x1]
    %v1540 = vsel %vm132, %v1534, 0.0
    %1541 = vadd.xlane.f32.xlu0 %v1540
    %v1542 = vpop.xlane.xlu0 %1541
    %v1543 = vsel %vm132, %v1535, 0.0
    %1544 = vadd.xlane.f32.xlu0 %v1543
    %v1545 = vpop.xlane.xlu0 %1544
    %v1546 = vmul.f32 %v1542, %v729
    %v1547 = vmul.f32 %v1545, %v729
    %v1548 = vsub.f32 %v1534, %v1546
    %v1549 = vsub.f32 %v1535, %v1547
    %v1550 = vmul.f32 %v1548, %v1548
    %v1551 = vmul.f32 %v1549, %v1549
    %v1552 = vsel %vm132, %v1550, 0.0
    %1553 = vadd.xlane.f32.xlu0 %v1552
    %v1554 = vpop.xlane.xlu0 %1553
    %v1555 = vsel %vm132, %v1551, 0.0
    %1556 = vadd.xlane.f32.xlu0 %v1555
    %v1557 = vpop.xlane.xlu0 %1556
    %v1558 = vmul.f32 %v1554, %v729
    %v1559 = vmul.f32 %v1557, %v729
    %v1560 = vadd.f32 %v1558, 1e-05
    %v1561 = vadd.f32 %v1559, 1e-05
    %v1562 = vrsqrt.pop %v1560
    %v1563 = vmul.f32 %v1562, %v1560
    %v1564 = vmul.f32 %v1563, %v1562
    %v1565 = vmul.f32 0.5, %v1564
    %v1566 = vsub.f32 1.5, %v1565
    %v1567 = vmul.f32 %v1562, %v1566
    %vm1568 = vweird.f32 %v1560
    %vm1569 = vweird.f32 %v1562
    %vm1570 = vmor %vm1568, %vm1569
    %v1571 = vsel %vm1570, %v1562, %v1567
    %v1572 = vrsqrt.pop %v1561
    %v1573 = vmul.f32 %v1572, %v1561
    %v1574 = vmul.f32 %v1573, %v1572
    %v1575 = vmul.f32 0.5, %v1574
    %v1576 = vsub.f32 1.5, %v1575
    %v1577 = vmul.f32 %v1572, %v1576
    %vm1578 = vweird.f32 %v1561
    %vm1579 = vweird.f32 %v1572
    %vm1580 = vmor %vm1578, %vm1579
    %v1581 = vsel %vm1580, %v1572, %v1577
    %v1582 = vmul.f32 %v1548, %v1571
    %v1583 = vmul.f32 %v1549, %v1581
    %v1585 = vperm.slane %v1537, 0
    %v1587 = vmul.f32 %v1582, %v1585
    %v1588 = vmul.f32 %v1583, %v1585
    %v1590 = vperm.slane %v1539, 0
    %v1592 = vadd.f32 %v1587, %v1590
    %v1593 = vadd.f32 %v1588, %v1590
    %v1594 = vpack.c.bf16 %v1593, %v1592
    %s1595 = scalar_lea.vmem %s9, 16
    %v1596 = vld [vmem:[%s1595] sm:$0xf]
    %v1597 = vld [vmem:[%s1595 + $0x4] sm:$0xf]
    %v1598 = vld [vmem:[%s1595 + $0x8] sm:$0xf]
    %v1599 = vld [vmem:[%s1595 + $0xc] sm:$0xf]
    %s1600 = scalar_lea.vmem %s10, 1
    %v1601 = vld [vmem:[%s1600] sm:$0x1]
    %v1603 = vperm.slane %v1601, 0
    %v1609 = vunpack.c.l.b16 %v1596
    %v1610 = vunpack.c.l.b16 %v1597
    %v1611 = vunpack.c.l.b16 %v1598
    %v1612 = vunpack.c.l.b16 %v1599
    %v1613 = vpack.c.b16 %v1610, %v1609
    %v1614 = vpack.c.b16 %v1612, %v1611
    %v1618 = vsel %vm132, %v1594, 0
    %1620 = vmatpush.bf16.msra.mxu0 0
    %1621 = vmatpush.bf16.msra.mxu0 0
    %1622 = vmatpush.bf16.msra.mxu0 0
    %1623 = vmatpush.bf16.msra.mxu0 0
    %1624 = vmatpush.bf16.msra.mxu0 0
    %1625 = vmatpush.bf16.msra.mxu0 0
    %1626 = vmatpush.bf16.msra.mxu0 %v1614
    %1627 = vmatpush.bf16.msra.mxu0 %v1613
    %1628 = vmatmul.bf16.gmra.mxu0 %v1618
    %v1629 = vpop.f32.mrf.mxu0
    %v1630 = vadd.f32 %v1603, %v1629
    %v1631 = vpop.f32.mrf.mxu0
    %v1632 = vadd.f32 %v1603, %v1631
    %1633 = vdwg.mxu0
    %v1634 = vmax.f32 %v1630, 0.0
    %v1635 = vmax.f32 %v1632, 0.0
    %v1636 = vpack.c.bf16 %v1635, %v1634
    %s1637 = scalar_lea.vmem %s11, 32
    %v1638 = vld [vmem:[%s1637] sm:$0xf]
    %v1639 = vld [vmem:[%s1637 + $0x4] sm:$0xf]
    %v1640 = vld [vmem:[%s1637 + $0x8] sm:$0xf]
    %v1641 = vld [vmem:[%s1637 + $0xc] sm:$0xf]
    %v1642 = vld [vmem:[%s1637 + $0x10] sm:$0xf]
    %v1643 = vld [vmem:[%s1637 + $0x14] sm:$0xf]
    %v1644 = vld [vmem:[%s1637 + $0x18] sm:$0xf]
    %v1645 = vld [vmem:[%s1637 + $0x1c] sm:$0xf]
    %s1646 = scalar_lea.vmem %s12, 1
    %v1647 = vld [vmem:[%s1646] sm:$0x1]
    %v1649 = vperm.slane %v1647, 0
    %v1659 = vunpack.c.l.b16 %v1638
    %v1660 = vunpack.c.l.b16 %v1639
    %v1661 = vunpack.c.l.b16 %v1640
    %v1662 = vunpack.c.l.b16 %v1641
    %v1663 = vunpack.c.l.b16 %v1642
    %v1664 = vunpack.c.l.b16 %v1643
    %v1665 = vunpack.c.l.b16 %v1644
    %v1666 = vunpack.c.l.b16 %v1645
    %v1667 = vpack.c.b16 %v1660, %v1659
    %v1668 = vpack.c.b16 %v1662, %v1661
    %v1669 = vpack.c.b16 %v1664, %v1663
    %v1670 = vpack.c.b16 %v1666, %v1665
    %v1676 = vsel %vm855, %v1636, 0
    %1678 = vmatpush.bf16.msra.mxu0 0
    %1679 = vmatpush.bf16.msra.mxu0 0
    %1680 = vmatpush.bf16.msra.mxu0 0
    %1681 = vmatpush.bf16.msra.mxu0 0
    %1682 = vmatpush.bf16.msra.mxu0 %v1670
    %1683 = vmatpush.bf16.msra.mxu0 %v1669
    %1684 = vmatpush.bf16.msra.mxu0 %v1668
    %1685 = vmatpush.bf16.msra.mxu0 %v1667
    %1686 = vmatmul.bf16.gmra.mxu0 %v1676
    %v1687 = vpop.f32.mrf.mxu0
    %v1688 = vadd.f32 %v1649, %v1687
    %v1689 = vpop.f32.mrf.mxu0
    %v1690 = vadd.f32 %v1649, %v1689
    %1691 = vdwg.mxu0
    %v1692 = vadd.f32 %v1592, %v1688
    %v1693 = vadd.f32 %v1593, %v1690
    %s1694 = scalar_lea.vmem %s13, 1
    %v1695 = vld [vmem:[%s1694] sm:$0x1]
    %s1696 = scalar_lea.vmem %s14, 1
    %v1697 = vld [vmem:[%s1696] sm:$0x1]
    %v1698 = vsel %vm132, %v1692, 0.0
    %1699 = vadd.xlane.f32.xlu0 %v1698
    %v1700 = vpop.xlane.xlu0 %1699
    %v1701 = vsel %vm132, %v1693, 0.0
    %1702 = vadd.xlane.f32.xlu0 %v1701
    %v1703 = vpop.xlane.xlu0 %1702
    %v1704 = vmul.f32 %v1700, %v729
    %v1705 = vmul.f32 %v1703, %v729
    %v1706 = vsub.f32 %v1692, %v1704
    %v1707 = vsub.f32 %v1693, %v1705
    %v1708 = vmul.f32 %v1706, %v1706
    %v1709 = vmul.f32 %v1707, %v1707
    %v1710 = vsel %vm132, %v1708, 0.0
    %1711 = vadd.xlane.f32.xlu0 %v1710
    %v1712 = vpop.xlane.xlu0 %1711
    %v1713 = vsel %vm132, %v1709, 0.0
    %1714 = vadd.xlane.f32.xlu0 %v1713
    %v1715 = vpop.xlane.xlu0 %1714
    %v1716 = vmul.f32 %v1712, %v729
    %v1717 = vmul.f32 %v1715, %v729
    %v1718 = vadd.f32 %v1716, 1e-05
    %v1719 = vadd.f32 %v1717, 1e-05
    %v1720 = vrsqrt.pop %v1718
    %v1721 = vmul.f32 %v1720, %v1718
    %v1722 = vmul.f32 %v1721, %v1720
    %v1723 = vmul.f32 0.5, %v1722
    %v1724 = vsub.f32 1.5, %v1723
    %v1725 = vmul.f32 %v1720, %v1724
    %vm1726 = vweird.f32 %v1718
    %vm1727 = vweird.f32 %v1720
    %vm1728 = vmor %vm1726, %vm1727
    %v1729 = vsel %vm1728, %v1720, %v1725
    %v1730 = vrsqrt.pop %v1719
    %v1731 = vmul.f32 %v1730, %v1719
    %v1732 = vmul.f32 %v1731, %v1730
    %v1733 = vmul.f32 0.5, %v1732
    %v1734 = vsub.f32 1.5, %v1733
    %v1735 = vmul.f32 %v1730, %v1734
    %vm1736 = vweird.f32 %v1719
    %vm1737 = vweird.f32 %v1730
    %vm1738 = vmor %vm1736, %vm1737
    %v1739 = vsel %vm1738, %v1730, %v1735
    %v1740 = vmul.f32 %v1706, %v1729
    %v1741 = vmul.f32 %v1707, %v1739
    %v1743 = vperm.slane %v1695, 0
    %v1745 = vmul.f32 %v1740, %v1743
    %v1746 = vmul.f32 %v1741, %v1743
    %v1748 = vperm.slane %v1697, 0
    %v1750 = vadd.f32 %v1745, %v1748
    %v1751 = vadd.f32 %v1746, %v1748
    %v1752 = vpack.c.bf16 %v1750, %v1750
    %v1753 = vpack.c.bf16 %v1751, %v1751
    %v1754 = vld [vmem:[%s15] sm:$0xf]
    %v1755 = vld [vmem:[%s15 + $0x4] sm:$0xf]
    %v1756 = vld [vmem:[%s15 + $0x8] sm:$0xf]
    %v1757 = vld [vmem:[%s15 + $0xc] sm:$0xf]
    %v1758 = vld [vmem:[#allocation2] sm:$0x1]
    %v1760 = vperm.slane %v1758, 0
    %v1764 = vunpack.c.l.b16 %v1752
    %v1765 = vunpack.c.l.b16 %v1753
    %v1766 = vrot.slane %v1764, 7
    %v1767 = vrot.slane %v1765, 6
    %vm1768 = vcmask 1041409
    %v1769 = vsel %vm1768, %v1767, %v1766
    %v1770 = vpack.c.b16 %v1769, %v1769
    %v1775 = vunpack.c.l.b16 %v1754
    %v1776 = vunpack.c.l.b16 %v1755
    %v1777 = vunpack.c.l.b16 %v1756
    %v1778 = vunpack.c.l.b16 %v1757
    %v1779 = vpack.c.b16 %v1776, %v1775
    %v1780 = vpack.c.b16 %v1778, %v1777
    %v1784 = vsel %vm132, %v1770, 0
    %1786 = vmatpush.bf16.msra.mxu0 0
    %1787 = vmatpush.bf16.msra.mxu0 0
    %1788 = vmatpush.bf16.msra.mxu0 0
    %1789 = vmatpush.bf16.msra.mxu0 0
    %1790 = vmatpush.bf16.msra.mxu0 0
    %1791 = vmatpush.bf16.msra.mxu0 0
    %1792 = vmatpush.bf16.msra.mxu0 %v1780
    %1793 = vmatpush.bf16.msra.mxu0 %v1779
    %1794 = vmatmul.bf16.gmra.mxu0 %v1784
    %v1795 = vpop.f32.mrf.mxu0
    %v1796 = vadd.f32 %v1760, %v1795
    %v1797 = vpop.f32.mrf.mxu0
    %1798 = vdwg.mxu0
    %v1800 = vrot.slane %v1796, 1
    %vm1802 = vcmask 0
    %1803 = vst.msk [vmem:[%s17] sm:$0x1] %vm1802, %v1796
    %1804 = vst.msk [vmem:[%s17 + $0x1] sm:$0x1] %vm1802, %v1800
    // Predicated region
    $region78: #{transformer_forward.1} parent=1 // pred_check
      _
    $region79: #{transformer_forward.1} parent=1 // pred_check_branch
      %1806 = sbr.rel (0) target = $region81
    $region80: #{transformer_forward.1} parent=1 // pred_region
      _
    $region81: #{transformer_forward.1} parent=1 // pred_fallthru
      _
    // Predicated region
    $region82: #{transformer_forward.1} parent=1 // pred_check
      _
    $region83: #{transformer_forward.1} parent=1 // pred_check_branch
      %1808 = sbr.rel (0) target = $region85
    $region84: #{transformer_forward.1} parent=1 // pred_region
      _
    $region85: #{transformer_forward.1} parent=1 // pred_fallthru
      _
    %1809 = vsyncpa [#allocation4], 1
    %1810 = vsyncpa [#allocation6], 1

</llo_original>
